<compile_context>
chip_gen: v6e
topology: v6e:2x2x1
jax: 0.10.0
libtpu: 0.0.40
codegen_flags: <defaults>
</compile_context>

<pallas_src>
import functools
import math

import jax
import jax.numpy as jnp
from jax.experimental import pallas as pl
from jax.experimental.pallas import tpu as pltpu


# ----------------------------- fused Pallas kernel --------------------------

def _dual_attention_kernel(q_ref, k_ref, v_ref, wqkv_ref, bqkv_ref,
                           wout_ref, bout_ref, e_ref, off_ref, beta_ref,
                           out_ref, attn_ref, *, scale):
    # q/k/v refs: (S, D); wqkv: (3, D, D) pre-transposed; bqkv: (3, 1, D)
    # wout: (D, D) pre-transposed; bout: (1, D)
    # e_ref: (h, D) head selector  E[i, a] = 1 iff a // d_k == i
    # off_ref: (D, D) kron mask    off[a, b] = 1 iff a % d_k == b % d_k
    # beta_ref: (1, 1) scalar in SMEM

    # --- fused QKV projections (lane-dense (S,D) @ (D,D) MXU matmuls) ---
    q = jnp.dot(q_ref[...], wqkv_ref[0], preferred_element_type=jnp.float32) + bqkv_ref[0]
    k = jnp.dot(k_ref[...], wqkv_ref[1], preferred_element_type=jnp.float32) + bqkv_ref[1]
    v = jnp.dot(v_ref[...], wqkv_ref[2], preferred_element_type=jnp.float32) + bqkv_ref[2]

    e_mat = e_ref[...]      # (h, D)
    off = off_ref[...]      # (D, D)

    # --- head-head ("channel") attention scores, kept lane-dense in D ---
    # scores[i, j] = sum_{s, c} Qh[i, s, c] * Kh[j, s, c]
    g = jnp.dot(q.T, k, preferred_element_type=jnp.float32) * off              # (D, D)
    scores = jnp.dot(jnp.dot(e_mat, g, preferred_element_type=jnp.float32),
                     e_mat.T, preferred_element_type=jnp.float32) * scale      # (h, h)

    m = jnp.max(scores, axis=-1, keepdims=True)
    p = jnp.exp(scores - m)
    attn = p * pl.reciprocal(jnp.sum(p, axis=-1, keepdims=True), approx=True)  # (h, h)
    attn_ref[...] = attn

    # --- x2[s, i*dk + c] = sum_j attn[i, j] * V[s, j*dk + c]  ==  V @ kron(attn, I_dk)^T ---
    attn_big = jnp.dot(jnp.dot(e_mat.T, attn, preferred_element_type=jnp.float32),
                       e_mat, preferred_element_type=jnp.float32)              # (D, D)
    wc = attn_big * off                                                        # kron(attn, I_dk)
    x2 = jnp.dot(v, wc.T, preferred_element_type=jnp.float32)                  # (S, D)

    # --- beta residual + output linear ---
    x = v + beta_ref[0, 0] * x2                                                # (S, D)
    out_ref[...] = (jnp.dot(x, wout_ref[...], preferred_element_type=jnp.float32)
                    + bout_ref[...])


def prepare_params(raw, heads):
    """One-time parameter prep: stack/pre-transpose weights, build constant selector matrices."""
    D = raw["wq"].shape[0]
    dk = D // heads
    return {
        "wqkv_t": jnp.stack([raw["wq"].T, raw["wk"].T, raw["wv"].T]),          # (3, D, D)
        "bqkv": jnp.stack([raw["bq"], raw["bk"], raw["bv"]])[:, None, :],      # (3, 1, D)
        "wout_t": raw["wout"].T,                                               # (D, D)
        "bout": raw["bout"][None, :],                                          # (1, D)
        "beta": jnp.asarray(raw["beta"], jnp.float32).reshape(1, 1),           # (1, 1) SMEM scalar
        "e_mat": jnp.repeat(jnp.eye(heads, dtype=jnp.float32), dk, axis=1),    # (h, D)
        "offmask": jnp.tile(jnp.eye(dk, dtype=jnp.float32), (heads, heads)),   # (D, D)
    }


def dual_attention_forward(params, query, key, value, mask=None, adj=None, *, heads):
    # mask / adj accepted for API parity; the reference PyTorch forward never uses them.
    del mask, adj
    B, S, D = query.shape
    kern = functools.partial(_dual_attention_kernel, scale=1.0 / math.sqrt(heads))
    out, attn = pl.pallas_call(
        kern,
        out_shape=(jax.ShapeDtypeStruct((B, S, D), jnp.float32),
                   jax.ShapeDtypeStruct((B, heads, heads), jnp.float32)),
        grid=(B,),
        in_specs=[
            pl.BlockSpec((None, S, D), lambda b: (b, 0, 0)),           # query
            pl.BlockSpec((None, S, D), lambda b: (b, 0, 0)),           # key
            pl.BlockSpec((None, S, D), lambda b: (b, 0, 0)),           # value
            pl.BlockSpec((3, D, D), lambda b: (0, 0, 0)),              # Wq/Wk/Wv^T stacked
            pl.BlockSpec((3, 1, D), lambda b: (0, 0, 0)),              # bq/bk/bv
            pl.BlockSpec((D, D), lambda b: (0, 0)),                    # Wout^T
            pl.BlockSpec((1, D), lambda b: (0, 0)),                    # bout
            pl.BlockSpec((heads, D), lambda b: (0, 0)),                # E (head selector)
            pl.BlockSpec((D, D), lambda b: (0, 0)),                    # kron offset mask
            pl.BlockSpec((1, 1), lambda b: (0, 0),
                         memory_space=pltpu.MemorySpace.SMEM),         # beta (scalar)
        ],
        out_specs=(
            pl.BlockSpec((None, S, D), lambda b: (b, 0, 0)),           # out
            pl.BlockSpec((None, heads, heads), lambda b: (b, 0, 0)),   # attn
        ),
        compiler_params=pltpu.CompilerParams(dimension_semantics=("parallel",)),
    )(query, key, value, params["wqkv_t"], params["bqkv"], params["wout_t"],
      params["bout"], params["e_mat"], params["offmask"], params["beta"])
    return out, attn


# ----------------------------- pure-JAX reference ---------------------------

def dual_attention_reference(raw, query, key, value, heads):
    B, S, D = query.shape
    dk = D // heads

    def lin(x, w, b):  # torch Linear: x @ W^T + b
        return jnp.einsum("bsd,od->bso", x, w) + b

    q = lin(query, raw["wq"], raw["bq"]).reshape(B, S, heads, dk).transpose(0, 2, 1, 3)
    k = lin(key, raw["wk"], raw["bk"]).reshape(B, S, heads, dk).transpose(0, 2, 1, 3)
    v = lin(value, raw["wv"], raw["bv"]).reshape(B, S, heads, dk).transpose(0, 2, 1, 3)

    scores = jnp.einsum("bisc,bjsc->bij", q, k) / math.sqrt(heads)
    attn = jax.nn.softmax(scores, axis=-1)
    x2 = jnp.einsum("bij,bjsc->bisc", attn, v)

    x = v + raw["beta"] * x2
    x = x.transpose(0, 2, 1, 3).reshape(B, S, D)
    out = jnp.einsum("bsd,od->bso", x, raw["wout"]) + raw["bout"]
    return out, attn


# ----------------------------- main ------------------------------------------

if __name__ == "__main__":
    B, S, D, H = 2, 8, 32, 8         # h=8, d_model=32 -> d_k=4
    key0 = jax.random.PRNGKey(0)
    ks = jax.random.split(key0, 12)

    raw = {
        "wq": 0.1 * jax.random.normal(ks[0], (D, D), jnp.float32),
        "bq": 0.1 * jax.random.normal(ks[1], (D,), jnp.float32),
        "wk": 0.1 * jax.random.normal(ks[2], (D, D), jnp.float32),
        "bk": 0.1 * jax.random.normal(ks[3], (D,), jnp.float32),
        "wv": 0.1 * jax.random.normal(ks[4], (D, D), jnp.float32),
        "bv": 0.1 * jax.random.normal(ks[5], (D,), jnp.float32),
        "wout": 0.1 * jax.random.normal(ks[6], (D, D), jnp.float32),
        "bout": 0.1 * jax.random.normal(ks[7], (D,), jnp.float32),
        # learnable scalar (0 at init in PyTorch); nonzero here so the channel path is exercised
        "beta": jnp.float32(0.5),
    }

    query = jax.random.normal(ks[8], (B, S, D), jnp.float32)
    key_ = jax.random.normal(ks[9], (B, S, D), jnp.float32)
    value = jax.random.normal(ks[10], (B, S, D), jnp.float32)

    params = prepare_params(raw, H)
    out, attn = dual_attention_forward(params, query, key_, value,
                                       mask=None, adj=None, heads=H)
    out = jax.block_until_ready(out)
    attn = jax.block_until_ready(attn)

    ref_out, ref_attn = dual_attention_reference(raw, query, key_, value, H)

    assert out.shape == (B, S, D) and attn.shape == (B, H, H)
    assert bool(jnp.all(jnp.isfinite(out))) and bool(jnp.all(jnp.isfinite(attn)))
    assert bool(jnp.allclose(out, ref_out, rtol=2e-2, atol=2e-2))
    assert bool(jnp.allclose(attn, ref_attn, rtol=2e-2, atol=2e-2))
    print("KERNEL_OK")
</pallas_src>

<mosaic_0001>
module attributes {stable_mosaic.version = 11 : i64} {
  func.func @_dual_attention_kernel(%arg0: i32, %arg1: memref<1x8x32xf32, #tpu.memory_space<vmem>>, %arg2: memref<1x8x32xf32, #tpu.memory_space<vmem>>, %arg3: memref<1x8x32xf32, #tpu.memory_space<vmem>>, %arg4: memref<3x32x32xf32, #tpu.memory_space<vmem>>, %arg5: memref<3x1x32xf32, #tpu.memory_space<vmem>>, %arg6: memref<32x32xf32, #tpu.memory_space<vmem>>, %arg7: memref<1x32xf32, #tpu.memory_space<vmem>>, %arg8: memref<8x32xf32, #tpu.memory_space<vmem>>, %arg9: memref<32x32xf32, #tpu.memory_space<vmem>>, %arg10: memref<1x1xf32, #tpu.memory_space<smem>>, %arg11: memref<1x8x32xf32, #tpu.memory_space<vmem>>, %arg12: memref<1x8x8xf32, #tpu.memory_space<vmem>>) attributes {dimension_semantics = [#tpu.dimension_semantics<parallel>], iteration_bounds = array<i64: 2>, scalar_prefetch = 0 : i64, scratch_operands = 0 : i64, tpu.core_type = #tpu.core_type<tc>, window_params = [{transform_indices = @transform_0, window_bounds = array<i64: 1, 8, 32>}, {transform_indices = @transform_1, window_bounds = array<i64: 1, 8, 32>}, {transform_indices = @transform_2, window_bounds = array<i64: 1, 8, 32>}, {pipeline_mode = #tpu.pipeline_mode<synchronous>, transform_indices = @transform_3, window_bounds = array<i64: 3, 32, 32>}, {pipeline_mode = #tpu.pipeline_mode<synchronous>, transform_indices = @transform_4, window_bounds = array<i64: 3, 1, 32>}, {pipeline_mode = #tpu.pipeline_mode<synchronous>, transform_indices = @transform_5, window_bounds = array<i64: 32, 32>}, {pipeline_mode = #tpu.pipeline_mode<synchronous>, transform_indices = @transform_6, window_bounds = array<i64: 1, 32>}, {pipeline_mode = #tpu.pipeline_mode<synchronous>, transform_indices = @transform_7, window_bounds = array<i64: 8, 32>}, {pipeline_mode = #tpu.pipeline_mode<synchronous>, transform_indices = @transform_8, window_bounds = array<i64: 32, 32>}, {transform_indices = @transform_9, window_bounds = array<i64: 1, 1>}, {transform_indices = @transform_10, window_bounds = array<i64: 1, 8, 32>}, {transform_indices = @transform_11, window_bounds = array<i64: 1, 8, 8>}]} {
    %c0 = arith.constant 0 : index
    %c0_0 = arith.constant 0 : index
    %c0_1 = arith.constant 0 : index
    %0 = vector.load %arg1[%c0, %c0_0, %c0_1] : memref<1x8x32xf32, #tpu.memory_space<vmem>>, vector<1x8x32xf32>
    %1 = vector.shape_cast %0 : vector<1x8x32xf32> to vector<8x32xf32>
    %c0_2 = arith.constant 0 : index
    %c0_3 = arith.constant 0 : index
    %c0_4 = arith.constant 0 : index
    %2 = vector.load %arg4[%c0_2, %c0_3, %c0_4] : memref<3x32x32xf32, #tpu.memory_space<vmem>>, vector<1x32x32xf32>
    %3 = vector.shape_cast %2 : vector<1x32x32xf32> to vector<32x32xf32>
    %cst = arith.constant dense<0.000000e+00> : vector<8x32xf32>
    %4 = tpu.matmul %1, %3, %cst {dimension_numbers = #tpu.dot_dimension_numbers<[1], [0], [0], [1], [0, 0, 1, 1], [], []>} : vector<8x32xf32>, vector<32x32xf32>, vector<8x32xf32> -> vector<8x32xf32>
    %c0_5 = arith.constant 0 : index
    %c0_6 = arith.constant 0 : index
    %c0_7 = arith.constant 0 : index
    %5 = vector.load %arg5[%c0_5, %c0_6, %c0_7] : memref<3x1x32xf32, #tpu.memory_space<vmem>>, vector<1x1x32xf32>
    %6 = vector.shape_cast %5 : vector<1x1x32xf32> to vector<1x32xf32>
    %7 = vector.broadcast %6 : vector<1x32xf32> to vector<8x32xf32>
    %8 = arith.addf %4, %7 : vector<8x32xf32>
    %c0_8 = arith.constant 0 : index
    %c0_9 = arith.constant 0 : index
    %c0_10 = arith.constant 0 : index
    %9 = vector.load %arg2[%c0_8, %c0_9, %c0_10] : memref<1x8x32xf32, #tpu.memory_space<vmem>>, vector<1x8x32xf32>
    %10 = vector.shape_cast %9 : vector<1x8x32xf32> to vector<8x32xf32>
    %c1 = arith.constant 1 : index
    %c0_11 = arith.constant 0 : index
    %c0_12 = arith.constant 0 : index
    %11 = vector.load %arg4[%c1, %c0_11, %c0_12] : memref<3x32x32xf32, #tpu.memory_space<vmem>>, vector<1x32x32xf32>
    %12 = vector.shape_cast %11 : vector<1x32x32xf32> to vector<32x32xf32>
    %cst_13 = arith.constant dense<0.000000e+00> : vector<8x32xf32>
    %13 = tpu.matmul %10, %12, %cst_13 {dimension_numbers = #tpu.dot_dimension_numbers<[1], [0], [0], [1], [0, 0, 1, 1], [], []>} : vector<8x32xf32>, vector<32x32xf32>, vector<8x32xf32> -> vector<8x32xf32>
    %c1_14 = arith.constant 1 : index
    %c0_15 = arith.constant 0 : index
    %c0_16 = arith.constant 0 : index
    %14 = vector.load %arg5[%c1_14, %c0_15, %c0_16] : memref<3x1x32xf32, #tpu.memory_space<vmem>>, vector<1x1x32xf32>
    %15 = vector.shape_cast %14 : vector<1x1x32xf32> to vector<1x32xf32>
    %16 = vector.broadcast %15 : vector<1x32xf32> to vector<8x32xf32>
    %17 = arith.addf %13, %16 : vector<8x32xf32>
    %c0_17 = arith.constant 0 : index
    %c0_18 = arith.constant 0 : index
    %c0_19 = arith.constant 0 : index
    %18 = vector.load %arg3[%c0_17, %c0_18, %c0_19] : memref<1x8x32xf32, #tpu.memory_space<vmem>>, vector<1x8x32xf32>
    %19 = vector.shape_cast %18 : vector<1x8x32xf32> to vector<8x32xf32>
    %c2 = arith.constant 2 : index
    %c0_20 = arith.constant 0 : index
    %c0_21 = arith.constant 0 : index
    %20 = vector.load %arg4[%c2, %c0_20, %c0_21] : memref<3x32x32xf32, #tpu.memory_space<vmem>>, vector<1x32x32xf32>
    %21 = vector.shape_cast %20 : vector<1x32x32xf32> to vector<32x32xf32>
    %cst_22 = arith.constant dense<0.000000e+00> : vector<8x32xf32>
    %22 = tpu.matmul %19, %21, %cst_22 {dimension_numbers = #tpu.dot_dimension_numbers<[1], [0], [0], [1], [0, 0, 1, 1], [], []>} : vector<8x32xf32>, vector<32x32xf32>, vector<8x32xf32> -> vector<8x32xf32>
    %c2_23 = arith.constant 2 : index
    %c0_24 = arith.constant 0 : index
    %c0_25 = arith.constant 0 : index
    %23 = vector.load %arg5[%c2_23, %c0_24, %c0_25] : memref<3x1x32xf32, #tpu.memory_space<vmem>>, vector<1x1x32xf32>
    %24 = vector.shape_cast %23 : vector<1x1x32xf32> to vector<1x32xf32>
    %25 = vector.broadcast %24 : vector<1x32xf32> to vector<8x32xf32>
    %26 = arith.addf %22, %25 : vector<8x32xf32>
    %c0_26 = arith.constant 0 : index
    %c0_27 = arith.constant 0 : index
    %27 = vector.load %arg8[%c0_26, %c0_27] : memref<8x32xf32, #tpu.memory_space<vmem>>, vector<8x32xf32>
    %c0_28 = arith.constant 0 : index
    %c0_29 = arith.constant 0 : index
    %28 = vector.load %arg9[%c0_28, %c0_29] : memref<32x32xf32, #tpu.memory_space<vmem>>, vector<32x32xf32>
    %29 = tpu.transpose %8, [1, 0] : vector<8x32xf32> -> vector<32x8xf32>
    %cst_30 = arith.constant dense<0.000000e+00> : vector<32x32xf32>
    %30 = tpu.matmul %29, %17, %cst_30 {dimension_numbers = #tpu.dot_dimension_numbers<[1], [0], [0], [1], [0, 0, 1, 1], [], []>} : vector<32x8xf32>, vector<8x32xf32>, vector<32x32xf32> -> vector<32x32xf32>
    %31 = arith.mulf %30, %28 : vector<32x32xf32>
    %cst_31 = arith.constant dense<0.000000e+00> : vector<8x32xf32>
    %32 = tpu.matmul %27, %31, %cst_31 {dimension_numbers = #tpu.dot_dimension_numbers<[1], [0], [0], [1], [0, 0, 1, 1], [], []>} : vector<8x32xf32>, vector<32x32xf32>, vector<8x32xf32> -> vector<8x32xf32>
    %33 = tpu.transpose %27, [1, 0] : vector<8x32xf32> -> vector<32x8xf32>
    %cst_32 = arith.constant dense<0.000000e+00> : vector<8x8xf32>
    %34 = tpu.matmul %32, %33, %cst_32 {dimension_numbers = #tpu.dot_dimension_numbers<[1], [0], [0], [1], [0, 0, 1, 1], [], []>} : vector<8x32xf32>, vector<32x8xf32>, vector<8x8xf32> -> vector<8x8xf32>
    %cst_33 = arith.constant 0.353553385 : f32
    %35 = vector.broadcast %cst_33 : f32 to vector<8x8xf32>
    %36 = arith.mulf %34, %35 : vector<8x8xf32>
    %cst_34 = arith.constant dense<0xFF800000> : vector<8xf32>
    %37 = vector.multi_reduction <maximumf>, %36, %cst_34 [1] : vector<8x8xf32> to vector<8xf32>
    %38 = vector.shape_cast %37 : vector<8xf32> to vector<8x1xf32>
    %39 = vector.broadcast %38 : vector<8x1xf32> to vector<8x8xf32>
    %40 = arith.subf %36, %39 : vector<8x8xf32>
    %41 = math.exp %40 : vector<8x8xf32>
    %cst_35 = arith.constant dense<0.000000e+00> : vector<8xf32>
    %42 = vector.multi_reduction <add>, %41, %cst_35 [1] : vector<8x8xf32> to vector<8xf32>
    %43 = vector.shape_cast %42 : vector<8xf32> to vector<8x1xf32>
    %44 = tpu.reciprocal %43 {approx = true} : vector<8x1xf32> -> vector<8x1xf32>
    %45 = vector.broadcast %44 : vector<8x1xf32> to vector<8x8xf32>
    %46 = arith.mulf %41, %45 : vector<8x8xf32>
    %c0_36 = arith.constant 0 : index
    %c0_37 = arith.constant 0 : index
    %c0_38 = arith.constant 0 : index
    %47 = vector.load %arg12[%c0_36, %c0_37, %c0_38] : memref<1x8x8xf32, #tpu.memory_space<vmem>>, vector<1x8x8xf32>
    %48 = vector.shape_cast %47 : vector<1x8x8xf32> to vector<8x8xf32>
    %49 = vector.shape_cast %46 : vector<8x8xf32> to vector<1x8x8xf32>
    tpu.vector_store %arg12[%c0_36, %c0_37, %c0_38], %49 {strides = array<i32>} : memref<1x8x8xf32, #tpu.memory_space<vmem>>, vector<1x8x8xf32>,
    %50 = tpu.transpose %27, [1, 0] : vector<8x32xf32> -> vector<32x8xf32>
    %cst_39 = arith.constant dense<0.000000e+00> : vector<32x8xf32>
    %51 = tpu.matmul %50, %46, %cst_39 {dimension_numbers = #tpu.dot_dimension_numbers<[1], [0], [0], [1], [0, 0, 1, 1], [], []>} : vector<32x8xf32>, vector<8x8xf32>, vector<32x8xf32> -> vector<32x8xf32>
    %cst_40 = arith.constant dense<0.000000e+00> : vector<32x32xf32>
    %52 = tpu.matmul %51, %27, %cst_40 {dimension_numbers = #tpu.dot_dimension_numbers<[1], [0], [0], [1], [0, 0, 1, 1], [], []>} : vector<32x8xf32>, vector<8x32xf32>, vector<32x32xf32> -> vector<32x32xf32>
    %53 = arith.mulf %52, %28 : vector<32x32xf32>
    %54 = tpu.transpose %53, [1, 0] : vector<32x32xf32> -> vector<32x32xf32>
    %cst_41 = arith.constant dense<0.000000e+00> : vector<8x32xf32>
    %55 = tpu.matmul %26, %54, %cst_41 {dimension_numbers = #tpu.dot_dimension_numbers<[1], [0], [0], [1], [0, 0, 1, 1], [], []>} : vector<8x32xf32>, vector<32x32xf32>, vector<8x32xf32> -> vector<8x32xf32>
    %c0_42 = arith.constant 0 : index
    %c0_43 = arith.constant 0 : index
    %56 = memref.load %arg10[%c0_42, %c0_43] : memref<1x1xf32, #tpu.memory_space<smem>>
    %57 = vector.broadcast %56 : f32 to vector<8x32xf32>
    %58 = arith.mulf %57, %55 : vector<8x32xf32>
    %59 = arith.addf %26, %58 : vector<8x32xf32>
    %c0_44 = arith.constant 0 : index
    %c0_45 = arith.constant 0 : index
    %60 = vector.load %arg6[%c0_44, %c0_45] : memref<32x32xf32, #tpu.memory_space<vmem>>, vector<32x32xf32>
    %cst_46 = arith.constant dense<0.000000e+00> : vector<8x32xf32>
    %61 = tpu.matmul %59, %60, %cst_46 {dimension_numbers = #tpu.dot_dimension_numbers<[1], [0], [0], [1], [0, 0, 1, 1], [], []>} : vector<8x32xf32>, vector<32x32xf32>, vector<8x32xf32> -> vector<8x32xf32>
    %c0_47 = arith.constant 0 : index
    %c0_48 = arith.constant 0 : index
    %62 = vector.load %arg7[%c0_47, %c0_48] : memref<1x32xf32, #tpu.memory_space<vmem>>, vector<1x32xf32>
    %63 = vector.broadcast %62 : vector<1x32xf32> to vector<8x32xf32>
    %64 = arith.addf %61, %63 : vector<8x32xf32>
    %c0_49 = arith.constant 0 : index
    %c0_50 = arith.constant 0 : index
    %c0_51 = arith.constant 0 : index
    %65 = vector.load %arg11[%c0_49, %c0_50, %c0_51] : memref<1x8x32xf32, #tpu.memory_space<vmem>>, vector<1x8x32xf32>
    %66 = vector.shape_cast %65 : vector<1x8x32xf32> to vector<8x32xf32>
    %67 = vector.shape_cast %64 : vector<8x32xf32> to vector<1x8x32xf32>
    tpu.vector_store %arg11[%c0_49, %c0_50, %c0_51], %67 {strides = array<i32>} : memref<1x8x32xf32, #tpu.memory_space<vmem>>, vector<1x8x32xf32>,
    return
  }
  func.func @transform_0(%arg0: i32) -> (i32, i32, i32) {
    %c0_i32 = arith.constant 0 : i32
    %c0_i32_0 = arith.constant 0 : i32
    %c0_i32_1 = arith.constant 0 : i32
    return %arg0, %c0_i32, %c0_i32_0 : i32, i32, i32
  }
  func.func @transform_1(%arg0: i32) -> (i32, i32, i32) {
    %c0_i32 = arith.constant 0 : i32
    %c0_i32_0 = arith.constant 0 : i32
    %c0_i32_1 = arith.constant 0 : i32
    return %arg0, %c0_i32, %c0_i32_0 : i32, i32, i32
  }
  func.func @transform_2(%arg0: i32) -> (i32, i32, i32) {
    %c0_i32 = arith.constant 0 : i32
    %c0_i32_0 = arith.constant 0 : i32
    %c0_i32_1 = arith.constant 0 : i32
    return %arg0, %c0_i32, %c0_i32_0 : i32, i32, i32
  }
  func.func @transform_3(%arg0: i32) -> (i32, i32, i32) {
    %c0_i32 = arith.constant 0 : i32
    %c0_i32_0 = arith.constant 0 : i32
    %c0_i32_1 = arith.constant 0 : i32
    %c0_i32_2 = arith.constant 0 : i32
    return %c0_i32, %c0_i32_0, %c0_i32_1 : i32, i32, i32
  }
  func.func @transform_4(%arg0: i32) -> (i32, i32, i32) {
    %c0_i32 = arith.constant 0 : i32
    %c0_i32_0 = arith.constant 0 : i32
    %c0_i32_1 = arith.constant 0 : i32
    %c0_i32_2 = arith.constant 0 : i32
    return %c0_i32, %c0_i32_0, %c0_i32_1 : i32, i32, i32
  }
  func.func @transform_5(%arg0: i32) -> (i32, i32) {
    %c0_i32 = arith.constant 0 : i32
    %c0_i32_0 = arith.constant 0 : i32
    %c0_i32_1 = arith.constant 0 : i32
    return %c0_i32, %c0_i32_0 : i32, i32
  }
  func.func @transform_6(%arg0: i32) -> (i32, i32) {
    %c0_i32 = arith.constant 0 : i32
    %c0_i32_0 = arith.constant 0 : i32
    %c0_i32_1 = arith.constant 0 : i32
    return %c0_i32, %c0_i32_0 : i32, i32
  }
  func.func @transform_7(%arg0: i32) -> (i32, i32) {
    %c0_i32 = arith.constant 0 : i32
    %c0_i32_0 = arith.constant 0 : i32
    %c0_i32_1 = arith.constant 0 : i32
    return %c0_i32, %c0_i32_0 : i32, i32
  }
  func.func @transform_8(%arg0: i32) -> (i32, i32) {
    %c0_i32 = arith.constant 0 : i32
    %c0_i32_0 = arith.constant 0 : i32
    %c0_i32_1 = arith.constant 0 : i32
    return %c0_i32, %c0_i32_0 : i32, i32
  }
  func.func @transform_9(%arg0: i32) -> (i32, i32) {
    %c0_i32 = arith.constant 0 : i32
    %c0_i32_0 = arith.constant 0 : i32
    %c0_i32_1 = arith.constant 0 : i32
    return %c0_i32, %c0_i32_0 : i32, i32
  }
  func.func @transform_10(%arg0: i32) -> (i32, i32, i32) {
    %c0_i32 = arith.constant 0 : i32
    %c0_i32_0 = arith.constant 0 : i32
    %c0_i32_1 = arith.constant 0 : i32
    return %arg0, %c0_i32, %c0_i32_0 : i32, i32, i32
  }
  func.func @transform_11(%arg0: i32) -> (i32, i32, i32) {
    %c0_i32 = arith.constant 0 : i32
    %c0_i32_0 = arith.constant 0 : i32
    %c0_i32_1 = arith.constant 0 : i32
    return %arg0, %c0_i32, %c0_i32_0 : i32, i32, i32
  }
}

</mosaic_0001>

<llo_original>
// kernel: tpu_custom_call.1
$region0: #{tpu_custom_call.1}
  #allocation0 [shape = 'u32[]', space=smem, size = 0x4, offset = 0x4, fixed_abs, tag = 'smem constant byte address 0x4 - core index']
  #allocation1 [shape = 'u32[144,128]{1,0:T(1,128)}', space=vmem, size = 0x12000, scoped, tag = 'internal scratch']
  #allocation2 [shape = 'f32[1,1]{1,0:T(1,128)S(6)}', space=smem, size = 0x200, scoped, tag = 'scoped memory for tpu_custom_call.1']
  %s0 = inlined_call_operand.hbm [shape: f32[2,8,32], index: 0, kind: input, shape index: {}]
  %s1 = inlined_call_operand.hbm [shape: f32[2,8,32], index: 1, kind: input, shape index: {}]
  %s2 = inlined_call_operand.hbm [shape: f32[2,8,32], index: 2, kind: input, shape index: {}]
  %s3 = inlined_call_operand.hbm [shape: f32[3,32,32], index: 3, kind: input, shape index: {}]
  %s4 = inlined_call_operand.vmem [shape: f32[3,1,32], index: 4, kind: input, shape index: {}]
  %s5 = inlined_call_operand.hbm [shape: f32[32,32], index: 5, kind: input, shape index: {}]
  %s6 = inlined_call_operand.vmem [shape: f32[1,32], index: 6, kind: input, shape index: {}]
  %s7 = inlined_call_operand.vmem [shape: f32[8,32], index: 7, kind: input, shape index: {}]
  %s8 = inlined_call_operand.hbm [shape: f32[32,32], index: 8, kind: input, shape index: {}]
  %s9 = inlined_call_operand.<no memory space> [shape: f32[1,1], index: 9, kind: input, shape index: {}]
  %s10 = inlined_call_operand.hbm [shape: f32[2,8,32], index: 10, kind: output, shape index: {0}]
  %s11 = inlined_call_operand.hbm [shape: f32[2,8,8], index: 11, kind: output, shape index: {1}]
  %12 = xla_tuple %s10, %s11
  %s13 = sld [smem:[#allocation0]]
  $region105: #{tpu_custom_call.1} parent=0
    _
  %s15 = ssub.s32 1, %s13
  %s16 = scalar_select 0, %s15, %s13
  %17 = sst [smem:[#allocation2]] %s9
  $region1: #{tpu_custom_call.1} parent=0
    #allocation3 [shape = 'u8[8192]{0}', space=vmem, size = 0x2000, scoped, tag = 'input window, operand 0']
    #allocation4 [shape = 's32[2]{0}', space=sflag, size = 0x8, scoped, tag = 'scoped memory for tpu_custom_call.1']
    #allocation5 [shape = 's32[2]{0}', space=sflag, size = 0x8, scoped, tag = 'scoped memory for tpu_custom_call.1']
    #allocation6 [shape = 'u8[8192]{0}', space=vmem, size = 0x2000, scoped, tag = 'input window, operand 1']
    #allocation7 [shape = 's32[2]{0}', space=sflag, size = 0x8, scoped, tag = 'scoped memory for tpu_custom_call.1']
    #allocation8 [shape = 'u8[8192]{0}', space=vmem, size = 0x2000, scoped, tag = 'input window, operand 2']
    #allocation9 [shape = 'u8[49152]{0}', space=vmem, size = 0xc000, scoped, tag = 'input window, operand 3, single buffered']
    #allocation10 [shape = 's32[1]{0}', space=sflag, size = 0x4, scoped, tag = 'scoped memory for tpu_custom_call.1']
    #allocation11 [shape = 'u8[16384]{0}', space=vmem, size = 0x4000, scoped, tag = 'input window, operand 5, single buffered']
    #allocation12 [shape = 'u8[16384]{0}', space=vmem, size = 0x4000, scoped, tag = 'input window, operand 8, single buffered']
    #allocation13 [shape = 's32[1]{0}', space=sflag, size = 0x4, scoped, tag = 'scoped memory for tpu_custom_call.1']
    #allocation14 [shape = 'u8[8192]{0}', space=vmem, size = 0x2000, scoped, tag = 'output window, operand 0']
    #allocation15 [shape = 'u8[8192]{0}', space=vmem, size = 0x2000, scoped, tag = 'output window, operand 1']
    #allocation16 [shape = 's32[2]{0}', space=sflag, size = 0x8, scoped, tag = 'scoped memory for tpu_custom_call.1']
    %18 = vsyncpa [#allocation4], 0
    %s19 = scalar_lea.sflag [#allocation4], 1
    %20 = vsyncpa %s19, 0
    %21 = vsyncpa [#allocation7], 0
    %s22 = scalar_lea.sflag [#allocation7], 1
    %23 = vsyncpa %s22, 0
    %24 = vsyncpa [#allocation10], 0
    %25 = vsyncpa [#allocation13], 0
    %26 = vsyncpa [#allocation5], 0
    %s27 = scalar_lea.sflag [#allocation5], 1
    %28 = vsyncpa %s27, 0
    %29 = vsyncpa [#allocation16], 0
    %s30 = scalar_lea.sflag [#allocation16], 1
    %31 = vsyncpa %s30, 0
    loop: start=0, step=1, limit=4
    $region2: #{tpu_custom_call.1} parent=1 // loop_pre_header
      _
    $region3: #{tpu_custom_call.1} parent=1 // loop_header
      %s33 = sphi 0, %s37
      %p34 = scmp.ge.s32.totalorder %s33, 4
      %s43 = sphi 0, %s45
      %s46 = sphi 0, %s43
      %s47 = sphi 0, %s46
      %s63 = sphi 0, %s47
      %s69 = sphi 0, %s71
      %s72 = sphi 0, %s69
      %s73 = sphi 0, %s72
      %s89 = sphi 0, %s73
      %s95 = sphi 0, %s97
      %s98 = sphi 0, %s95
      %s99 = sphi 0, %s98
      %s115 = sphi 0, %s99
      %s119 = sphi 0, %s119
      %s121 = sphi 0, %s119
      %s122 = sphi 0, %s121
      %s136 = sphi 0, %s122
      %s140 = sphi 0, %s140
      %s142 = sphi 0, %s140
      %s143 = sphi 0, %s142
      %s157 = sphi 0, %s143
      %s161 = sphi 0, %s161
      %s163 = sphi 0, %s161
      %s164 = sphi 0, %s163
      %s178 = sphi 0, %s164
      %s182 = sphi 0, %s182
      %s184 = sphi 0, %s182
      %s185 = sphi 0, %s184
      %s199 = sphi 0, %s185
      %s203 = sphi 0, %s203
      %s205 = sphi 0, %s203
      %s206 = sphi 0, %s205
      %s220 = sphi 0, %s206
      %s224 = sphi 0, %s224
      %s226 = sphi 0, %s224
      %s227 = sphi 0, %s226
      %s241 = sphi 0, %s227
      %s245 = sphi 0, %s245
      %s247 = sphi 0, %s245
      %s248 = sphi 0, %s247
      %s262 = sphi 0, %s248
      %s268 = sphi 0, %s270
      %s271 = sphi 0, %s268
      %s272 = sphi 0, %s271
      %s288 = sphi 0, %s272
      %s294 = sphi 0, %s296
      %s297 = sphi 0, %s294
      %s298 = sphi 0, %s297
      %s314 = sphi 0, %s298
    $region4: #{tpu_custom_call.1} parent=1 // loop_header_branch
      %36 = sbr.rel (%p34) target = $region8
    $region5: #{tpu_custom_call.1} parent=1 // loop_body
      %s38 = ssub.s32 %s33, 1
      %s39 = ssub.s32 %s33, 2
      %s40 = sadd.s32 %s33, 1
      %s41 = ssub.s32 %s33, %s40
      %p42 = scmp.eq.s32.totalorder %s41, 0
      %s44 = sadd.s32 %s43, 1
      %s45 = scalar_select %p42, %s43, %s44
      %p48 = pneg %p42
      %p49 = scmp.eq.s32.totalorder %s33, 1
      %p50 = por %p48, %p49
      %p51 = scmp.ne.s32.totalorder %s43, %s46
      %p52 = scmp.eq.s32.totalorder %s33, 0
      %p53 = por %p51, %p52
      %p54 = scmp.ne.s32.totalorder %s43, %s46
      %p55 = scmp.eq.s32.totalorder %s38, 1
      %p56 = por %p54, %p55
      %p57 = scmp.ne.s32.totalorder %s46, %s47
      %p58 = scmp.eq.s32.totalorder %s38, 0
      %p59 = por %p57, %p58
      %p60 = scmp.ne.s32.totalorder %s46, %s47
      %p61 = scmp.eq.s32.totalorder %s39, 1
      %p62 = por %p60, %p61
      %p64 = scmp.ne.s32.totalorder %s47, %s63
      %p65 = scmp.eq.s32.totalorder %s39, 0
      %p66 = por %p64, %p65
      %s67 = ssub.s32 %s33, %s40
      %p68 = scmp.eq.s32.totalorder %s67, 0
      %s70 = sadd.s32 %s69, 1
      %s71 = scalar_select %p68, %s69, %s70
      %p74 = pneg %p68
      %p75 = scmp.eq.s32.totalorder %s33, 1
      %p76 = por %p74, %p75
      %p77 = scmp.ne.s32.totalorder %s69, %s72
      %p78 = scmp.eq.s32.totalorder %s33, 0
      %p79 = por %p77, %p78
      %p80 = scmp.ne.s32.totalorder %s69, %s72
      %p81 = scmp.eq.s32.totalorder %s38, 1
      %p82 = por %p80, %p81
      %p83 = scmp.ne.s32.totalorder %s72, %s73
      %p84 = scmp.eq.s32.totalorder %s38, 0
      %p85 = por %p83, %p84
      %p86 = scmp.ne.s32.totalorder %s72, %s73
      %p87 = scmp.eq.s32.totalorder %s39, 1
      %p88 = por %p86, %p87
      %p90 = scmp.ne.s32.totalorder %s73, %s89
      %p91 = scmp.eq.s32.totalorder %s39, 0
      %p92 = por %p90, %p91
      %s93 = ssub.s32 %s33, %s40
      %p94 = scmp.eq.s32.totalorder %s93, 0
      %s96 = sadd.s32 %s95, 1
      %s97 = scalar_select %p94, %s95, %s96
      %p100 = pneg %p94
      %p101 = scmp.eq.s32.totalorder %s33, 1
      %p102 = por %p100, %p101
      %p103 = scmp.ne.s32.totalorder %s95, %s98
      %p104 = scmp.eq.s32.totalorder %s33, 0
      %p105 = por %p103, %p104
      %p106 = scmp.ne.s32.totalorder %s95, %s98
      %p107 = scmp.eq.s32.totalorder %s38, 1
      %p108 = por %p106, %p107
      %p109 = scmp.ne.s32.totalorder %s98, %s99
      %p110 = scmp.eq.s32.totalorder %s38, 0
      %p111 = por %p109, %p110
      %p112 = scmp.ne.s32.totalorder %s98, %s99
      %p113 = scmp.eq.s32.totalorder %s39, 1
      %p114 = por %p112, %p113
      %p116 = scmp.ne.s32.totalorder %s99, %s115
      %p117 = scmp.eq.s32.totalorder %s39, 0
      %p118 = por %p116, %p117
      %s120 = sadd.s32 %s119, 1
      %p123 = scmp.eq.s32.totalorder %s33, 1
      %p124 = scmp.ne.s32.totalorder %s119, %s121
      %p125 = scmp.eq.s32.totalorder %s33, 0
      %p126 = por %p124, %p125
      %p127 = scmp.ne.s32.totalorder %s119, %s121
      %p128 = scmp.eq.s32.totalorder %s38, 1
      %p129 = por %p127, %p128
      %p130 = scmp.ne.s32.totalorder %s121, %s122
      %p131 = scmp.eq.s32.totalorder %s38, 0
      %p132 = por %p130, %p131
      %p133 = scmp.ne.s32.totalorder %s121, %s122
      %p134 = scmp.eq.s32.totalorder %s39, 1
      %p135 = por %p133, %p134
      %p137 = scmp.ne.s32.totalorder %s122, %s136
      %p138 = scmp.eq.s32.totalorder %s39, 0
      %p139 = por %p137, %p138
      %s141 = sadd.s32 %s140, 1
      %p144 = scmp.eq.s32.totalorder %s33, 1
      %p145 = scmp.ne.s32.totalorder %s140, %s142
      %p146 = scmp.eq.s32.totalorder %s33, 0
      %p147 = por %p145, %p146
      %p148 = scmp.ne.s32.totalorder %s140, %s142
      %p149 = scmp.eq.s32.totalorder %s38, 1
      %p150 = por %p148, %p149
      %p151 = scmp.ne.s32.totalorder %s142, %s143
      %p152 = scmp.eq.s32.totalorder %s38, 0
      %p153 = por %p151, %p152
      %p154 = scmp.ne.s32.totalorder %s142, %s143
      %p155 = scmp.eq.s32.totalorder %s39, 1
      %p156 = por %p154, %p155
      %p158 = scmp.ne.s32.totalorder %s143, %s157
      %p159 = scmp.eq.s32.totalorder %s39, 0
      %p160 = por %p158, %p159
      %s162 = sadd.s32 %s161, 1
      %p165 = scmp.eq.s32.totalorder %s33, 1
      %p166 = scmp.ne.s32.totalorder %s161, %s163
      %p167 = scmp.eq.s32.totalorder %s33, 0
      %p168 = por %p166, %p167
      %p169 = scmp.ne.s32.totalorder %s161, %s163
      %p170 = scmp.eq.s32.totalorder %s38, 1
      %p171 = por %p169, %p170
      %p172 = scmp.ne.s32.totalorder %s163, %s164
      %p173 = scmp.eq.s32.totalorder %s38, 0
      %p174 = por %p172, %p173
      %p175 = scmp.ne.s32.totalorder %s163, %s164
      %p176 = scmp.eq.s32.totalorder %s39, 1
      %p177 = por %p175, %p176
      %p179 = scmp.ne.s32.totalorder %s164, %s178
      %p180 = scmp.eq.s32.totalorder %s39, 0
      %p181 = por %p179, %p180
      %s183 = sadd.s32 %s182, 1
      %p186 = scmp.eq.s32.totalorder %s33, 1
      %p187 = scmp.ne.s32.totalorder %s182, %s184
      %p188 = scmp.eq.s32.totalorder %s33, 0
      %p189 = por %p187, %p188
      %p190 = scmp.ne.s32.totalorder %s182, %s184
      %p191 = scmp.eq.s32.totalorder %s38, 1
      %p192 = por %p190, %p191
      %p193 = scmp.ne.s32.totalorder %s184, %s185
      %p194 = scmp.eq.s32.totalorder %s38, 0
      %p195 = por %p193, %p194
      %p196 = scmp.ne.s32.totalorder %s184, %s185
      %p197 = scmp.eq.s32.totalorder %s39, 1
      %p198 = por %p196, %p197
      %p200 = scmp.ne.s32.totalorder %s185, %s199
      %p201 = scmp.eq.s32.totalorder %s39, 0
      %p202 = por %p200, %p201
      %s204 = sadd.s32 %s203, 1
      %p207 = scmp.eq.s32.totalorder %s33, 1
      %p208 = scmp.ne.s32.totalorder %s203, %s205
      %p209 = scmp.eq.s32.totalorder %s33, 0
      %p210 = por %p208, %p209
      %p211 = scmp.ne.s32.totalorder %s203, %s205
      %p212 = scmp.eq.s32.totalorder %s38, 1
      %p213 = por %p211, %p212
      %p214 = scmp.ne.s32.totalorder %s205, %s206
      %p215 = scmp.eq.s32.totalorder %s38, 0
      %p216 = por %p214, %p215
      %p217 = scmp.ne.s32.totalorder %s205, %s206
      %p218 = scmp.eq.s32.totalorder %s39, 1
      %p219 = por %p217, %p218
      %p221 = scmp.ne.s32.totalorder %s206, %s220
      %p222 = scmp.eq.s32.totalorder %s39, 0
      %p223 = por %p221, %p222
      %s225 = sadd.s32 %s224, 1
      %p228 = scmp.eq.s32.totalorder %s33, 1
      %p229 = scmp.ne.s32.totalorder %s224, %s226
      %p230 = scmp.eq.s32.totalorder %s33, 0
      %p231 = por %p229, %p230
      %p232 = scmp.ne.s32.totalorder %s224, %s226
      %p233 = scmp.eq.s32.totalorder %s38, 1
      %p234 = por %p232, %p233
      %p235 = scmp.ne.s32.totalorder %s226, %s227
      %p236 = scmp.eq.s32.totalorder %s38, 0
      %p237 = por %p235, %p236
      %p238 = scmp.ne.s32.totalorder %s226, %s227
      %p239 = scmp.eq.s32.totalorder %s39, 1
      %p240 = por %p238, %p239
      %p242 = scmp.ne.s32.totalorder %s227, %s241
      %p243 = scmp.eq.s32.totalorder %s39, 0
      %p244 = por %p242, %p243
      %s246 = sadd.s32 %s245, 1
      %p249 = scmp.eq.s32.totalorder %s33, 1
      %p250 = scmp.ne.s32.totalorder %s245, %s247
      %p251 = scmp.eq.s32.totalorder %s33, 0
      %p252 = por %p250, %p251
      %p253 = scmp.ne.s32.totalorder %s245, %s247
      %p254 = scmp.eq.s32.totalorder %s38, 1
      %p255 = por %p253, %p254
      %p256 = scmp.ne.s32.totalorder %s247, %s248
      %p257 = scmp.eq.s32.totalorder %s38, 0
      %p258 = por %p256, %p257
      %p259 = scmp.ne.s32.totalorder %s247, %s248
      %p260 = scmp.eq.s32.totalorder %s39, 1
      %p261 = por %p259, %p260
      %p263 = scmp.ne.s32.totalorder %s248, %s262
      %p264 = scmp.eq.s32.totalorder %s39, 0
      %p265 = por %p263, %p264
      %s266 = ssub.s32 %s33, %s40
      %p267 = scmp.eq.s32.totalorder %s266, 0
      %s269 = sadd.s32 %s268, 1
      %s270 = scalar_select %p267, %s268, %s269
      %p273 = pneg %p267
      %p274 = scmp.eq.s32.totalorder %s33, 1
      %p275 = por %p273, %p274
      %p276 = scmp.ne.s32.totalorder %s268, %s271
      %p277 = scmp.eq.s32.totalorder %s33, 0
      %p278 = por %p276, %p277
      %p279 = scmp.ne.s32.totalorder %s268, %s271
      %p280 = scmp.eq.s32.totalorder %s38, 1
      %p281 = por %p279, %p280
      %p282 = scmp.ne.s32.totalorder %s271, %s272
      %p283 = scmp.eq.s32.totalorder %s38, 0
      %p284 = por %p282, %p283
      %p285 = scmp.ne.s32.totalorder %s271, %s272
      %p286 = scmp.eq.s32.totalorder %s39, 1
      %p287 = por %p285, %p286
      %p289 = scmp.ne.s32.totalorder %s272, %s288
      %p290 = scmp.eq.s32.totalorder %s39, 0
      %p291 = por %p289, %p290
      %s292 = ssub.s32 %s33, %s40
      %p293 = scmp.eq.s32.totalorder %s292, 0
      %s295 = sadd.s32 %s294, 1
      %s296 = scalar_select %p293, %s294, %s295
      %p299 = pneg %p293
      %p300 = scmp.eq.s32.totalorder %s33, 1
      %p301 = por %p299, %p300
      %p302 = scmp.ne.s32.totalorder %s294, %s297
      %p303 = scmp.eq.s32.totalorder %s33, 0
      %p304 = por %p302, %p303
      %p305 = scmp.ne.s32.totalorder %s294, %s297
      %p306 = scmp.eq.s32.totalorder %s38, 1
      %p307 = por %p305, %p306
      %p308 = scmp.ne.s32.totalorder %s297, %s298
      %p309 = scmp.eq.s32.totalorder %s38, 0
      %p310 = por %p308, %p309
      %p311 = scmp.ne.s32.totalorder %s297, %s298
      %p312 = scmp.eq.s32.totalorder %s39, 1
      %p313 = por %p311, %p312
      %p315 = scmp.ne.s32.totalorder %s298, %s314
      %p316 = scmp.eq.s32.totalorder %s39, 0
      %p317 = por %p315, %p316
      %p318 = scmp.le.s32.totalorder 1, %s33
      %p319 = scmp.lt.s32.totalorder %s33, 3
      %p320 = pnand %p318, %p319
      %p321 = pneg %p320
      // Predicated region
      $region9: #{tpu_custom_call.1} parent=5 // pred_check
        _
      $region10: #{tpu_custom_call.1} parent=5 // pred_check_branch
        %323 = sbr.rel (%p320) target = $region12
      $region11: #{tpu_custom_call.1} parent=5 // pred_region
        %s324 = ssub.s32 %s33, 1
        // Predicated region
        $region13: #{tpu_custom_call.1} parent=11 // pred_check
          %p325 = pneg %p132
        $region14: #{tpu_custom_call.1} parent=11 // pred_check_branch
          %327 = sbr.rel (%p325) target = $region16
        $region15: #{tpu_custom_call.1} parent=11 // pred_region
          %s329 = ssub.s32 1536, 1536
          %330 = vsyncadd [#allocation10], %s329
          %s331 = sshll.u32 [#allocation9], 4
          %s332 = int_to_ptr.vmem [resolvable:$true] %s331
          %337 = dma.hbm_to_vmem [thread:$0]  %s3, 1536, %s332, [#allocation10], 128, 128, 8
        $region16: #{tpu_custom_call.1} parent=11 // pred_fallthru
          _
        // Predicated region
        $region17: #{tpu_custom_call.1} parent=11 // pred_check
          %p338 = pneg %p153
        $region18: #{tpu_custom_call.1} parent=11 // pred_check_branch
          %340 = sbr.rel (%p338) target = $region20
        $region19: #{tpu_custom_call.1} parent=11 // pred_region
          _
        $region20: #{tpu_custom_call.1} parent=11 // pred_fallthru
          _
        // Predicated region
        $region21: #{tpu_custom_call.1} parent=11 // pred_check
          %p341 = pneg %p174
        $region22: #{tpu_custom_call.1} parent=11 // pred_check_branch
          %343 = sbr.rel (%p341) target = $region24
        $region23: #{tpu_custom_call.1} parent=11 // pred_region
          %s345 = ssub.s32 512, 512
          %346 = vsyncadd [#allocation10], %s345
          %s347 = sshll.u32 [#allocation11], 4
          %s348 = int_to_ptr.vmem [resolvable:$true] %s347
          %353 = dma.hbm_to_vmem [thread:$0]  %s5, 512, %s348, [#allocation10], 128, 128, 8
        $region24: #{tpu_custom_call.1} parent=11 // pred_fallthru
          _
        // Predicated region
        $region25: #{tpu_custom_call.1} parent=11 // pred_check
          %p354 = pneg %p195
        $region26: #{tpu_custom_call.1} parent=11 // pred_check_branch
          %356 = sbr.rel (%p354) target = $region28
        $region27: #{tpu_custom_call.1} parent=11 // pred_region
          _
        $region28: #{tpu_custom_call.1} parent=11 // pred_fallthru
          _
        // Predicated region
        $region29: #{tpu_custom_call.1} parent=11 // pred_check
          %p357 = pneg %p216
        $region30: #{tpu_custom_call.1} parent=11 // pred_check_branch
          %359 = sbr.rel (%p357) target = $region32
        $region31: #{tpu_custom_call.1} parent=11 // pred_region
          _
        $region32: #{tpu_custom_call.1} parent=11 // pred_fallthru
          _
        // Predicated region
        $region33: #{tpu_custom_call.1} parent=11 // pred_check
          %p360 = pneg %p237
        $region34: #{tpu_custom_call.1} parent=11 // pred_check_branch
          %362 = sbr.rel (%p360) target = $region36
        $region35: #{tpu_custom_call.1} parent=11 // pred_region
          %s364 = ssub.s32 512, 512
          %365 = vsyncadd [#allocation13], %s364
          %s366 = sshll.u32 [#allocation12], 4
          %s367 = int_to_ptr.vmem [resolvable:$true] %s366
          %372 = dma.hbm_to_vmem [thread:$0]  %s8, 512, %s367, [#allocation13], 128, 128, 8
        $region36: #{tpu_custom_call.1} parent=11 // pred_fallthru
          _
        // Predicated region
        $region37: #{tpu_custom_call.1} parent=11 // pred_check
          %p373 = pneg %p258
        $region38: #{tpu_custom_call.1} parent=11 // pred_check_branch
          %375 = sbr.rel (%p373) target = $region40
        $region39: #{tpu_custom_call.1} parent=11 // pred_region
          _
        $region40: #{tpu_custom_call.1} parent=11 // pred_fallthru
          _
      $region12: #{tpu_custom_call.1} parent=5 // pred_fallthru
        _
      %p376 = scmp.lt.s32.totalorder %s33, 2
      // Predicated region
      $region41: #{tpu_custom_call.1} parent=5 // pred_check
        %p377 = pneg %p376
      $region42: #{tpu_custom_call.1} parent=5 // pred_check_branch
        %379 = sbr.rel (%p377) target = $region44
      $region43: #{tpu_custom_call.1} parent=5 // pred_region
        // Predicated region
        $region45: #{tpu_custom_call.1} parent=43 // pred_check
          %p380 = pneg %p53
        $region46: #{tpu_custom_call.1} parent=43 // pred_check_branch
          %382 = sbr.rel (%p380) target = $region48
        $region47: #{tpu_custom_call.1} parent=43 // pred_region
          %s383 = sand.u32 %s43, 1
          %s384 = scalar_lea.sflag [#allocation4], %s383
          %s385 = sand.u32 %s43, 1
          %s386 = smul.addr %s385, 8
          %s387 = scalar_lea.vmem [#allocation3], %s386
          %s389 = ssub.s32 128, 128
          %390 = vsyncadd %s384, %s389
          %s391 = smul.addr %s33, 128
          %s392 = scalar_lea.hbm %s0, %s391
          %s394 = sshll.u32 %s387, 4
          %s395 = int_to_ptr.vmem [resolvable:$true] %s394
          %397 = dma.hbm_to_vmem [thread:$0]  %s392, 128, %s395, %s384
        $region48: #{tpu_custom_call.1} parent=43 // pred_fallthru
          _
        // Predicated region
        $region49: #{tpu_custom_call.1} parent=43 // pred_check
          %p398 = pneg %p79
        $region50: #{tpu_custom_call.1} parent=43 // pred_check_branch
          %400 = sbr.rel (%p398) target = $region52
        $region51: #{tpu_custom_call.1} parent=43 // pred_region
          %s401 = sand.u32 %s33, 1
          %s402 = scalar_lea.sflag [#allocation7], %s401
          %s403 = sand.u32 %s69, 1
          %s404 = smul.addr %s403, 8
          %s405 = scalar_lea.vmem [#allocation6], %s404
          %s407 = ssub.s32 128, 128
          %408 = vsyncadd %s402, %s407
          %s409 = smul.addr %s33, 128
          %s410 = scalar_lea.hbm %s1, %s409
          %s412 = sshll.u32 %s405, 4
          %s413 = int_to_ptr.vmem [resolvable:$true] %s412
          %415 = dma.hbm_to_vmem [thread:$0]  %s410, 128, %s413, %s402
        $region52: #{tpu_custom_call.1} parent=43 // pred_fallthru
          _
        // Predicated region
        $region53: #{tpu_custom_call.1} parent=43 // pred_check
          %p416 = pneg %p105
        $region54: #{tpu_custom_call.1} parent=43 // pred_check_branch
          %418 = sbr.rel (%p416) target = $region56
        $region55: #{tpu_custom_call.1} parent=43 // pred_region
          %s419 = sand.u32 %s33, 1
          %s420 = scalar_lea.sflag [#allocation7], %s419
          %s421 = sand.u32 %s95, 1
          %s422 = smul.addr %s421, 8
          %s423 = scalar_lea.vmem [#allocation8], %s422
          %s425 = ssub.s32 128, 128
          %426 = vsyncadd %s420, %s425
          %s427 = smul.addr %s33, 128
          %s428 = scalar_lea.hbm %s2, %s427
          %s430 = sshll.u32 %s423, 4
          %s431 = int_to_ptr.vmem [resolvable:$true] %s430
          %433 = dma.hbm_to_vmem [thread:$0]  %s428, 128, %s431, %s420
        $region56: #{tpu_custom_call.1} parent=43 // pred_fallthru
          _
      $region44: #{tpu_custom_call.1} parent=5 // pred_fallthru
        _
      %p434 = scmp.le.s32.totalorder 1, %s33
      %p435 = scmp.lt.s32.totalorder %s33, 3
      %p436 = pnand %p434, %p435
      %p437 = pneg %p436
      // Predicated region
      $region57: #{tpu_custom_call.1} parent=5 // pred_check
        _
      $region58: #{tpu_custom_call.1} parent=5 // pred_check_branch
        %439 = sbr.rel (%p436) target = $region60
      $region59: #{tpu_custom_call.1} parent=5 // pred_region
        %s440 = ssub.s32 %s33, 1
        %s441 = sand.u32 %s46, 1
        %s442 = scalar_lea.sflag [#allocation4], %s441
        %s443 = sand.u32 %s46, 1
        %s444 = smul.addr %s443, 8
        %s445 = scalar_lea.vmem [#allocation3], %s444
        // Predicated region
        $region61: #{tpu_custom_call.1} parent=59 // pred_check
          %p446 = pneg %p59
        $region62: #{tpu_custom_call.1} parent=59 // pred_check_branch
          %448 = sbr.rel (%p446) target = $region64
        $region63: #{tpu_custom_call.1} parent=59 // pred_region
          %449 = dma.done %s442, 128
        $region64: #{tpu_custom_call.1} parent=59 // pred_fallthru
          _
        %s450 = sand.u32 %s38, 1
        %s451 = scalar_lea.sflag [#allocation7], %s450
        %s452 = sand.u32 %s72, 1
        %s453 = smul.addr %s452, 8
        %s454 = scalar_lea.vmem [#allocation6], %s453
        // Predicated region
        $region65: #{tpu_custom_call.1} parent=59 // pred_check
          %p455 = pneg %p85
        $region66: #{tpu_custom_call.1} parent=59 // pred_check_branch
          %457 = sbr.rel (%p455) target = $region68
        $region67: #{tpu_custom_call.1} parent=59 // pred_region
          %458 = dma.done %s451, 128
        $region68: #{tpu_custom_call.1} parent=59 // pred_fallthru
          _
        %s459 = sand.u32 %s38, 1
        %s460 = scalar_lea.sflag [#allocation7], %s459
        %s461 = sand.u32 %s98, 1
        %s462 = smul.addr %s461, 8
        %s463 = scalar_lea.vmem [#allocation8], %s462
        // Predicated region
        $region69: #{tpu_custom_call.1} parent=59 // pred_check
          %p464 = pneg %p111
        $region70: #{tpu_custom_call.1} parent=59 // pred_check_branch
          %466 = sbr.rel (%p464) target = $region72
        $region71: #{tpu_custom_call.1} parent=59 // pred_region
          %467 = dma.done %s460, 128
        $region72: #{tpu_custom_call.1} parent=59 // pred_fallthru
          _
        // Predicated region
        $region73: #{tpu_custom_call.1} parent=59 // pred_check
          %p468 = pneg %p132
        $region74: #{tpu_custom_call.1} parent=59 // pred_check_branch
          %470 = sbr.rel (%p468) target = $region76
        $region75: #{tpu_custom_call.1} parent=59 // pred_region
          %471 = dma.done [#allocation10], 1536
        $region76: #{tpu_custom_call.1} parent=59 // pred_fallthru
          _
        // Predicated region
        $region77: #{tpu_custom_call.1} parent=59 // pred_check
          %p472 = pneg %p174
        $region78: #{tpu_custom_call.1} parent=59 // pred_check_branch
          %474 = sbr.rel (%p472) target = $region80
        $region79: #{tpu_custom_call.1} parent=59 // pred_region
          %475 = dma.done [#allocation10], 512
        $region80: #{tpu_custom_call.1} parent=59 // pred_fallthru
          _
        // Predicated region
        $region81: #{tpu_custom_call.1} parent=59 // pred_check
          %p476 = pneg %p237
        $region82: #{tpu_custom_call.1} parent=59 // pred_check_branch
          %478 = sbr.rel (%p476) target = $region84
        $region83: #{tpu_custom_call.1} parent=59 // pred_region
          %479 = dma.done [#allocation13], 512
        $region84: #{tpu_custom_call.1} parent=59 // pred_fallthru
          _
        %s480 = sand.u32 %s46, 1
        %s481 = scalar_lea.sflag [#allocation4], %s480
        %s482 = sand.u32 %s46, 1
        %s483 = smul.addr %s482, 8
        %s484 = scalar_lea.vmem [#allocation3], %s483
        %p485 = pneg %p59
        %p486 = pneg %p56
        %s487 = sand.u32 %s38, 1
        %s488 = scalar_lea.sflag [#allocation7], %s487
        %s489 = sand.u32 %s72, 1
        %s490 = smul.addr %s489, 8
        %s491 = scalar_lea.vmem [#allocation6], %s490
        %p492 = pneg %p85
        %p493 = pneg %p82
        %s494 = sand.u32 %s38, 1
        %s495 = scalar_lea.sflag [#allocation7], %s494
        %s496 = sand.u32 %s98, 1
        %s497 = smul.addr %s496, 8
        %s498 = scalar_lea.vmem [#allocation8], %s497
        %p499 = pneg %p111
        %p500 = pneg %p108
        %p501 = pneg %p132
        %p502 = pneg %p129
        %p503 = pneg %p153
        %p504 = pneg %p150
        %p505 = pneg %p174
        %p506 = pneg %p171
        %p507 = pneg %p195
        %p508 = pneg %p192
        %p509 = pneg %p216
        %p510 = pneg %p213
        %p511 = pneg %p237
        %p512 = pneg %p234
        %p513 = pneg %p258
        %p514 = pneg %p255
        %p515 = pneg %p284
        %p516 = pneg %p281
        %s517 = sand.u32 %s271, 1
        %s518 = scalar_lea.sflag [#allocation5], %s517
        %s519 = sand.u32 %s271, 1
        %s520 = smul.addr %s519, 8
        %s521 = scalar_lea.vmem [#allocation14], %s520
        %p522 = pneg %p310
        %p523 = pneg %p307
        %s524 = sand.u32 %s297, 1
        %s525 = scalar_lea.sflag [#allocation16], %s524
        %s526 = sand.u32 %s297, 1
        %s527 = smul.addr %s526, 8
        %s528 = scalar_lea.vmem [#allocation15], %s527
        %v529 = vld [vmem:[%s445] sm:$0xff]
        %v530 = vld [vmem:[#allocation9] sm:$0xff]
        %v531 = vld [vmem:[#allocation9 + $0x8] sm:$0xff]
        %v532 = vld [vmem:[#allocation9 + $0x10] sm:$0xff]
        %v533 = vld [vmem:[#allocation9 + $0x18] sm:$0xff]
        %v534 = vld [vmem:[%s4] sm:$0x1]
        %v536 = vlaneseq
        %v537 = vshrl.u32 %v536, 7
        %v538 = vsub.s32 0, %v537
        %v539 = vrot.slane %v534, %v538
        %vm541 = vcmask 261120
        %v543 = vsel %vm541, %v529, 0
        %545 = vmatprep.subr.mxu0 0.0
        %546 = vmatpush1.msra.mxu0 0.0
        %547 = vmatprep.subr.mxu0 0.0
        %548 = vmatpush1.msra.mxu0 0.0
        %549 = vmatprep.subr.mxu0 0.0
        %550 = vmatpush1.msra.mxu0 0.0
        %551 = vmatprep.subr.mxu0 0.0
        %552 = vmatpush1.msra.mxu0 0.0
        %553 = vmatprep.subr.mxu0 0.0
        %554 = vmatpush1.msra.mxu0 0.0
        %555 = vmatprep.subr.mxu0 0.0
        %556 = vmatpush1.msra.mxu0 0.0
        %557 = vmatprep.subr.mxu0 0.0
        %558 = vmatpush1.msra.mxu0 0.0
        %559 = vmatprep.subr.mxu0 0.0
        %560 = vmatpush1.msra.mxu0 0.0
        %561 = vmatprep.subr.mxu0 0.0
        %562 = vmatpush1.msra.mxu0 0.0
        %563 = vmatprep.subr.mxu0 0.0
        %564 = vmatpush1.msra.mxu0 0.0
        %565 = vmatprep.subr.mxu0 0.0
        %566 = vmatpush1.msra.mxu0 0.0
        %567 = vmatprep.subr.mxu0 0.0
        %568 = vmatpush1.msra.mxu0 0.0
        %569 = vmatprep.subr.mxu0 0.0
        %570 = vmatpush1.msra.mxu0 %v533
        %571 = vmatprep.subr.mxu0 0.0
        %572 = vmatpush1.msra.mxu0 %v532
        %573 = vmatprep.subr.mxu0 0.0
        %574 = vmatpush1.msra.mxu0 %v531
        %575 = vmatprep.subr.mxu0 0.0
        %576 = vmatpush1.msra.mxu0 %v530
        %577 = vmatprep.subr.mxu0 0.0
        %578 = vmatpush2.msra.mxu0 0.0
        %579 = vmatprep.subr.mxu0 0.0
        %580 = vmatpush2.msra.mxu0 0.0
        %581 = vmatprep.subr.mxu0 0.0
        %582 = vmatpush2.msra.mxu0 0.0
        %583 = vmatprep.subr.mxu0 0.0
        %584 = vmatpush2.msra.mxu0 0.0
        %585 = vmatprep.subr.mxu0 0.0
        %586 = vmatpush2.msra.mxu0 0.0
        %587 = vmatprep.subr.mxu0 0.0
        %588 = vmatpush2.msra.mxu0 0.0
        %589 = vmatprep.subr.mxu0 0.0
        %590 = vmatpush2.msra.mxu0 0.0
        %591 = vmatprep.subr.mxu0 0.0
        %592 = vmatpush2.msra.mxu0 0.0
        %593 = vmatprep.subr.mxu0 0.0
        %594 = vmatpush2.msra.mxu0 0.0
        %595 = vmatprep.subr.mxu0 0.0
        %596 = vmatpush2.msra.mxu0 0.0
        %597 = vmatprep.subr.mxu0 0.0
        %598 = vmatpush2.msra.mxu0 0.0
        %599 = vmatprep.subr.mxu0 0.0
        %600 = vmatpush2.msra.mxu0 0.0
        %601 = vmatprep.subr.mxu0 0.0
        %602 = vmatpush2.msra.mxu0 0.0
        %603 = vmatprep.subr.mxu0 0.0
        %604 = vmatpush2.msra.mxu0 0.0
        %605 = vmatprep.subr.mxu0 0.0
        %606 = vmatpush2.msra.mxu0 0.0
        %607 = vmatprep.subr.mxu0 0.0
        %608 = vmatpush2.msra.mxu0 0.0
        %609 = vmatprep.mubr.f32.mxu0 0.0
        %610 = vmatmul.mubr.f32.gmra.mxu0 %v543
        %v611 = vpop.f32.mrf.mxu0
        %v612 = vadd.f32 %v539, %v611
        %v613 = vpop.f32.mrf.mxu0
        %614 = vdwg.mxu0
        %v615 = vld [vmem:[%s454] sm:$0xff]
        %s616 = scalar_lea.vmem [#allocation9], 32
        %v617 = vld [vmem:[%s616] sm:$0xff]
        %v618 = vld [vmem:[%s616 + $0x8] sm:$0xff]
        %v619 = vld [vmem:[%s616 + $0x10] sm:$0xff]
        %v620 = vld [vmem:[%s616 + $0x18] sm:$0xff]
        %s621 = scalar_lea.vmem %s4, 1
        %v622 = vld [vmem:[%s621] sm:$0x1]
        %v624 = vlaneseq
        %v625 = vshrl.u32 %v624, 7
        %v626 = vsub.s32 0, %v625
        %v627 = vrot.slane %v622, %v626
        %v630 = vsel %vm541, %v615, 0
        %632 = vmatprep.subr.mxu0 0.0
        %633 = vmatpush1.msra.mxu0 0.0
        %634 = vmatprep.subr.mxu0 0.0
        %635 = vmatpush1.msra.mxu0 0.0
        %636 = vmatprep.subr.mxu0 0.0
        %637 = vmatpush1.msra.mxu0 0.0
        %638 = vmatprep.subr.mxu0 0.0
        %639 = vmatpush1.msra.mxu0 0.0
        %640 = vmatprep.subr.mxu0 0.0
        %641 = vmatpush1.msra.mxu0 0.0
        %642 = vmatprep.subr.mxu0 0.0
        %643 = vmatpush1.msra.mxu0 0.0
        %644 = vmatprep.subr.mxu0 0.0
        %645 = vmatpush1.msra.mxu0 0.0
        %646 = vmatprep.subr.mxu0 0.0
        %647 = vmatpush1.msra.mxu0 0.0
        %648 = vmatprep.subr.mxu0 0.0
        %649 = vmatpush1.msra.mxu0 0.0
        %650 = vmatprep.subr.mxu0 0.0
        %651 = vmatpush1.msra.mxu0 0.0
        %652 = vmatprep.subr.mxu0 0.0
        %653 = vmatpush1.msra.mxu0 0.0
        %654 = vmatprep.subr.mxu0 0.0
        %655 = vmatpush1.msra.mxu0 0.0
        %656 = vmatprep.subr.mxu0 0.0
        %657 = vmatpush1.msra.mxu0 %v620
        %658 = vmatprep.subr.mxu0 0.0
        %659 = vmatpush1.msra.mxu0 %v619
        %660 = vmatprep.subr.mxu0 0.0
        %661 = vmatpush1.msra.mxu0 %v618
        %662 = vmatprep.subr.mxu0 0.0
        %663 = vmatpush1.msra.mxu0 %v617
        %664 = vmatprep.subr.mxu0 0.0
        %665 = vmatpush2.msra.mxu0 0.0
        %666 = vmatprep.subr.mxu0 0.0
        %667 = vmatpush2.msra.mxu0 0.0
        %668 = vmatprep.subr.mxu0 0.0
        %669 = vmatpush2.msra.mxu0 0.0
        %670 = vmatprep.subr.mxu0 0.0
        %671 = vmatpush2.msra.mxu0 0.0
        %672 = vmatprep.subr.mxu0 0.0
        %673 = vmatpush2.msra.mxu0 0.0
        %674 = vmatprep.subr.mxu0 0.0
        %675 = vmatpush2.msra.mxu0 0.0
        %676 = vmatprep.subr.mxu0 0.0
        %677 = vmatpush2.msra.mxu0 0.0
        %678 = vmatprep.subr.mxu0 0.0
        %679 = vmatpush2.msra.mxu0 0.0
        %680 = vmatprep.subr.mxu0 0.0
        %681 = vmatpush2.msra.mxu0 0.0
        %682 = vmatprep.subr.mxu0 0.0
        %683 = vmatpush2.msra.mxu0 0.0
        %684 = vmatprep.subr.mxu0 0.0
        %685 = vmatpush2.msra.mxu0 0.0
        %686 = vmatprep.subr.mxu0 0.0
        %687 = vmatpush2.msra.mxu0 0.0
        %688 = vmatprep.subr.mxu0 0.0
        %689 = vmatpush2.msra.mxu0 0.0
        %690 = vmatprep.subr.mxu0 0.0
        %691 = vmatpush2.msra.mxu0 0.0
        %692 = vmatprep.subr.mxu0 0.0
        %693 = vmatpush2.msra.mxu0 0.0
        %694 = vmatprep.subr.mxu0 0.0
        %695 = vmatpush2.msra.mxu0 0.0
        %696 = vmatprep.mubr.f32.mxu0 0.0
        %697 = vmatmul.mubr.f32.gmra.mxu0 %v630
        %v698 = vpop.f32.mrf.mxu0
        %v699 = vadd.f32 %v627, %v698
        %v700 = vpop.f32.mrf.mxu0
        %701 = vdwg.mxu0
        %v702 = vld [vmem:[%s463] sm:$0xff]
        %s703 = scalar_lea.vmem [#allocation9], 64
        %v704 = vld [vmem:[%s703] sm:$0xff]
        %v705 = vld [vmem:[%s703 + $0x8] sm:$0xff]
        %v706 = vld [vmem:[%s703 + $0x10] sm:$0xff]
        %v707 = vld [vmem:[%s703 + $0x18] sm:$0xff]
        %s708 = scalar_lea.vmem %s4, 2
        %v709 = vld [vmem:[%s708] sm:$0x1]
        %v711 = vlaneseq
        %v712 = vshrl.u32 %v711, 7
        %v713 = vsub.s32 0, %v712
        %v714 = vrot.slane %v709, %v713
        %v717 = vsel %vm541, %v702, 0
        %719 = vmatprep.subr.mxu0 0.0
        %720 = vmatpush1.msra.mxu0 0.0
        %721 = vmatprep.subr.mxu0 0.0
        %722 = vmatpush1.msra.mxu0 0.0
        %723 = vmatprep.subr.mxu0 0.0
        %724 = vmatpush1.msra.mxu0 0.0
        %725 = vmatprep.subr.mxu0 0.0
        %726 = vmatpush1.msra.mxu0 0.0
        %727 = vmatprep.subr.mxu0 0.0
        %728 = vmatpush1.msra.mxu0 0.0
        %729 = vmatprep.subr.mxu0 0.0
        %730 = vmatpush1.msra.mxu0 0.0
        %731 = vmatprep.subr.mxu0 0.0
        %732 = vmatpush1.msra.mxu0 0.0
        %733 = vmatprep.subr.mxu0 0.0
        %734 = vmatpush1.msra.mxu0 0.0
        %735 = vmatprep.subr.mxu0 0.0
        %736 = vmatpush1.msra.mxu0 0.0
        %737 = vmatprep.subr.mxu0 0.0
        %738 = vmatpush1.msra.mxu0 0.0
        %739 = vmatprep.subr.mxu0 0.0
        %740 = vmatpush1.msra.mxu0 0.0
        %741 = vmatprep.subr.mxu0 0.0
        %742 = vmatpush1.msra.mxu0 0.0
        %743 = vmatprep.subr.mxu0 0.0
        %744 = vmatpush1.msra.mxu0 %v707
        %745 = vmatprep.subr.mxu0 0.0
        %746 = vmatpush1.msra.mxu0 %v706
        %747 = vmatprep.subr.mxu0 0.0
        %748 = vmatpush1.msra.mxu0 %v705
        %749 = vmatprep.subr.mxu0 0.0
        %750 = vmatpush1.msra.mxu0 %v704
        %751 = vmatprep.subr.mxu0 0.0
        %752 = vmatpush2.msra.mxu0 0.0
        %753 = vmatprep.subr.mxu0 0.0
        %754 = vmatpush2.msra.mxu0 0.0
        %755 = vmatprep.subr.mxu0 0.0
        %756 = vmatpush2.msra.mxu0 0.0
        %757 = vmatprep.subr.mxu0 0.0
        %758 = vmatpush2.msra.mxu0 0.0
        %759 = vmatprep.subr.mxu0 0.0
        %760 = vmatpush2.msra.mxu0 0.0
        %761 = vmatprep.subr.mxu0 0.0
        %762 = vmatpush2.msra.mxu0 0.0
        %763 = vmatprep.subr.mxu0 0.0
        %764 = vmatpush2.msra.mxu0 0.0
        %765 = vmatprep.subr.mxu0 0.0
        %766 = vmatpush2.msra.mxu0 0.0
        %767 = vmatprep.subr.mxu0 0.0
        %768 = vmatpush2.msra.mxu0 0.0
        %769 = vmatprep.subr.mxu0 0.0
        %770 = vmatpush2.msra.mxu0 0.0
        %771 = vmatprep.subr.mxu0 0.0
        %772 = vmatpush2.msra.mxu0 0.0
        %773 = vmatprep.subr.mxu0 0.0
        %774 = vmatpush2.msra.mxu0 0.0
        %775 = vmatprep.subr.mxu0 0.0
        %776 = vmatpush2.msra.mxu0 0.0
        %777 = vmatprep.subr.mxu0 0.0
        %778 = vmatpush2.msra.mxu0 0.0
        %779 = vmatprep.subr.mxu0 0.0
        %780 = vmatpush2.msra.mxu0 0.0
        %781 = vmatprep.subr.mxu0 0.0
        %782 = vmatpush2.msra.mxu0 0.0
        %783 = vmatprep.mubr.f32.mxu0 0.0
        %784 = vmatmul.mubr.f32.gmra.mxu0 %v717
        %v785 = vpop.f32.mrf.mxu0
        %v786 = vadd.f32 %v714, %v785
        %v787 = vpop.f32.mrf.mxu0
        %788 = vdwg.mxu0
        %v789 = vld [vmem:[%s7] sm:$0xff]
        %v790 = vld [vmem:[#allocation12] sm:$0xff]
        %v791 = vld [vmem:[#allocation12 + $0x8] sm:$0xff]
        %v792 = vld [vmem:[#allocation12 + $0x10] sm:$0xff]
        %v793 = vld [vmem:[#allocation12 + $0x18] sm:$0xff]
        %794 = vxpose.xlu0.b32.start [1/16] %v612, 128
        %795 = vxpose.xlu0.b32.cont [2/16] 0.0, 128
        %796 = vxpose.xlu0.b32.cont [3/16] 0.0, 128
        %797 = vxpose.xlu0.b32.cont [4/16] 0.0, 128
        %798 = vxpose.xlu0.b32.cont [5/16] 0.0, 128
        %799 = vxpose.xlu0.b32.cont [6/16] 0.0, 128
        %800 = vxpose.xlu0.b32.cont [7/16] 0.0, 128
        %801 = vxpose.xlu0.b32.cont [8/16] 0.0, 128
        %802 = vxpose.xlu0.b32.cont [9/16] 0.0, 128
        %803 = vxpose.xlu0.b32.cont [10/16] 0.0, 128
        %804 = vxpose.xlu0.b32.cont [11/16] 0.0, 128
        %805 = vxpose.xlu0.b32.cont [12/16] 0.0, 128
        %806 = vxpose.xlu0.b32.cont [13/16] 0.0, 128
        %807 = vxpose.xlu0.b32.cont [14/16] 0.0, 128
        %808 = vxpose.xlu0.b32.cont [15/16] 0.0, 128
        %809 = vxpose.xlu0.b32.end [16/16] 0.0, 128
        %v810 = vpop.trf.xlu0
        %v811 = vpop.trf.xlu0
        %v812 = vpop.trf.xlu0
        %v813 = vpop.trf.xlu0
        %v814 = vpop.trf.xlu0
        %v815 = vpop.trf.xlu0
        %v816 = vpop.trf.xlu0
        %v817 = vpop.trf.xlu0
        %v818 = vpop.trf.xlu0
        %v819 = vpop.trf.xlu0
        %v820 = vpop.trf.xlu0
        %v821 = vpop.trf.xlu0
        %v822 = vpop.trf.xlu0
        %v823 = vpop.trf.xlu0
        %v824 = vpop.trf.xlu0
        %v825 = vpop.trf.xlu0
        %vm826 = vcmask 64512
        %v828 = vsel %vm826, %v810, 0
        %v831 = vsel %vm826, %v811, 0
        %v834 = vsel %vm826, %v812, 0
        %v837 = vsel %vm826, %v813, 0
        %839 = vmatprep.subr.mxu0 0.0
        %840 = vmatpush1.msra.mxu0 0.0
        %841 = vmatprep.subr.mxu0 0.0
        %842 = vmatpush1.msra.mxu0 0.0
        %843 = vmatprep.subr.mxu0 0.0
        %844 = vmatpush1.msra.mxu0 0.0
        %845 = vmatprep.subr.mxu0 0.0
        %846 = vmatpush1.msra.mxu0 0.0
        %847 = vmatprep.subr.mxu0 0.0
        %848 = vmatpush1.msra.mxu0 0.0
        %849 = vmatprep.subr.mxu0 0.0
        %850 = vmatpush1.msra.mxu0 0.0
        %851 = vmatprep.subr.mxu0 0.0
        %852 = vmatpush1.msra.mxu0 0.0
        %853 = vmatprep.subr.mxu0 0.0
        %854 = vmatpush1.msra.mxu0 0.0
        %855 = vmatprep.subr.mxu0 0.0
        %856 = vmatpush1.msra.mxu0 0.0
        %857 = vmatprep.subr.mxu0 0.0
        %858 = vmatpush1.msra.mxu0 0.0
        %859 = vmatprep.subr.mxu0 0.0
        %860 = vmatpush1.msra.mxu0 0.0
        %861 = vmatprep.subr.mxu0 0.0
        %862 = vmatpush1.msra.mxu0 0.0
        %863 = vmatprep.subr.mxu0 0.0
        %864 = vmatpush1.msra.mxu0 0.0
        %865 = vmatprep.subr.mxu0 0.0
        %866 = vmatpush1.msra.mxu0 0.0
        %867 = vmatprep.subr.mxu0 0.0
        %868 = vmatpush1.msra.mxu0 0.0
        %869 = vmatprep.subr.mxu0 0.0
        %870 = vmatpush1.msra.mxu0 %v699
        %871 = vmatprep.subr.mxu0 0.0
        %872 = vmatpush2.msra.mxu0 0.0
        %873 = vmatprep.subr.mxu0 0.0
        %874 = vmatpush2.msra.mxu0 0.0
        %875 = vmatprep.subr.mxu0 0.0
        %876 = vmatpush2.msra.mxu0 0.0
        %877 = vmatprep.subr.mxu0 0.0
        %878 = vmatpush2.msra.mxu0 0.0
        %879 = vmatprep.subr.mxu0 0.0
        %880 = vmatpush2.msra.mxu0 0.0
        %881 = vmatprep.subr.mxu0 0.0
        %882 = vmatpush2.msra.mxu0 0.0
        %883 = vmatprep.subr.mxu0 0.0
        %884 = vmatpush2.msra.mxu0 0.0
        %885 = vmatprep.subr.mxu0 0.0
        %886 = vmatpush2.msra.mxu0 0.0
        %887 = vmatprep.subr.mxu0 0.0
        %888 = vmatpush2.msra.mxu0 0.0
        %889 = vmatprep.subr.mxu0 0.0
        %890 = vmatpush2.msra.mxu0 0.0
        %891 = vmatprep.subr.mxu0 0.0
        %892 = vmatpush2.msra.mxu0 0.0
        %893 = vmatprep.subr.mxu0 0.0
        %894 = vmatpush2.msra.mxu0 0.0
        %895 = vmatprep.subr.mxu0 0.0
        %896 = vmatpush2.msra.mxu0 0.0
        %897 = vmatprep.subr.mxu0 0.0
        %898 = vmatpush2.msra.mxu0 0.0
        %899 = vmatprep.subr.mxu0 0.0
        %900 = vmatpush2.msra.mxu0 0.0
        %901 = vmatprep.subr.mxu0 0.0
        %902 = vmatpush2.msra.mxu0 0.0
        %903 = vmatprep.mubr.f32.mxu0 0.0
        %904 = vmatmul.mubr.f32.gmra.mxu0 %v828
        %v905 = vpop.f32.mrf.mxu0
        %v906 = vadd.f32 0.0, %v905
        %v907 = vpop.f32.mrf.mxu0
        %908 = vmatprep.mubr.f32.mxu0 0.0
        %909 = vmatmul.mubr.f32.gmra.mxu0 %v831
        %v910 = vpop.f32.mrf.mxu0
        %v911 = vadd.f32 0.0, %v910
        %v912 = vpop.f32.mrf.mxu0
        %913 = vmatprep.mubr.f32.mxu0 0.0
        %914 = vmatmul.mubr.f32.gmra.mxu0 %v834
        %v915 = vpop.f32.mrf.mxu0
        %v916 = vadd.f32 0.0, %v915
        %v917 = vpop.f32.mrf.mxu0
        %918 = vmatprep.mubr.f32.mxu0 0.0
        %919 = vmatmul.mubr.f32.gmra.mxu0 %v837
        %v920 = vpop.f32.mrf.mxu0
        %v921 = vadd.f32 0.0, %v920
        %v922 = vpop.f32.mrf.mxu0
        %923 = vdwg.mxu0
        %v924 = vmul.f32 %v906, %v790
        %v925 = vmul.f32 %v911, %v791
        %v926 = vmul.f32 %v916, %v792
        %v927 = vmul.f32 %v921, %v793
        %v929 = vsel %vm541, %v789, 0
        %931 = vmatprep.subr.mxu0 0.0
        %932 = vmatpush1.msra.mxu0 0.0
        %933 = vmatprep.subr.mxu0 0.0
        %934 = vmatpush1.msra.mxu0 0.0
        %935 = vmatprep.subr.mxu0 0.0
        %936 = vmatpush1.msra.mxu0 0.0
        %937 = vmatprep.subr.mxu0 0.0
        %938 = vmatpush1.msra.mxu0 0.0
        %939 = vmatprep.subr.mxu0 0.0
        %940 = vmatpush1.msra.mxu0 0.0
        %941 = vmatprep.subr.mxu0 0.0
        %942 = vmatpush1.msra.mxu0 0.0
        %943 = vmatprep.subr.mxu0 0.0
        %944 = vmatpush1.msra.mxu0 0.0
        %945 = vmatprep.subr.mxu0 0.0
        %946 = vmatpush1.msra.mxu0 0.0
        %947 = vmatprep.subr.mxu0 0.0
        %948 = vmatpush1.msra.mxu0 0.0
        %949 = vmatprep.subr.mxu0 0.0
        %950 = vmatpush1.msra.mxu0 0.0
        %951 = vmatprep.subr.mxu0 0.0
        %952 = vmatpush1.msra.mxu0 0.0
        %953 = vmatprep.subr.mxu0 0.0
        %954 = vmatpush1.msra.mxu0 0.0
        %955 = vmatprep.subr.mxu0 0.0
        %956 = vmatpush1.msra.mxu0 %v927
        %957 = vmatprep.subr.mxu0 0.0
        %958 = vmatpush1.msra.mxu0 %v926
        %959 = vmatprep.subr.mxu0 0.0
        %960 = vmatpush1.msra.mxu0 %v925
        %961 = vmatprep.subr.mxu0 0.0
        %962 = vmatpush1.msra.mxu0 %v924
        %963 = vmatprep.subr.mxu0 0.0
        %964 = vmatpush2.msra.mxu0 0.0
        %965 = vmatprep.subr.mxu0 0.0
        %966 = vmatpush2.msra.mxu0 0.0
        %967 = vmatprep.subr.mxu0 0.0
        %968 = vmatpush2.msra.mxu0 0.0
        %969 = vmatprep.subr.mxu0 0.0
        %970 = vmatpush2.msra.mxu0 0.0
        %971 = vmatprep.subr.mxu0 0.0
        %972 = vmatpush2.msra.mxu0 0.0
        %973 = vmatprep.subr.mxu0 0.0
        %974 = vmatpush2.msra.mxu0 0.0
        %975 = vmatprep.subr.mxu0 0.0
        %976 = vmatpush2.msra.mxu0 0.0
        %977 = vmatprep.subr.mxu0 0.0
        %978 = vmatpush2.msra.mxu0 0.0
        %979 = vmatprep.subr.mxu0 0.0
        %980 = vmatpush2.msra.mxu0 0.0
        %981 = vmatprep.subr.mxu0 0.0
        %982 = vmatpush2.msra.mxu0 0.0
        %983 = vmatprep.subr.mxu0 0.0
        %984 = vmatpush2.msra.mxu0 0.0
        %985 = vmatprep.subr.mxu0 0.0
        %986 = vmatpush2.msra.mxu0 0.0
        %987 = vmatprep.subr.mxu0 0.0
        %988 = vmatpush2.msra.mxu0 0.0
        %989 = vmatprep.subr.mxu0 0.0
        %990 = vmatpush2.msra.mxu0 0.0
        %991 = vmatprep.subr.mxu0 0.0
        %992 = vmatpush2.msra.mxu0 0.0
        %993 = vmatprep.subr.mxu0 0.0
        %994 = vmatpush2.msra.mxu0 0.0
        %995 = vmatprep.mubr.f32.mxu0 0.0
        %996 = vmatmul.mubr.f32.gmra.mxu0 %v929
        %v997 = vpop.f32.mrf.mxu0
        %v998 = vadd.f32 0.0, %v997
        %v999 = vpop.f32.mrf.mxu0
        %1000 = vdwg.mxu0
        %1001 = vxpose.xlu0.b32.start [1/16] %v789, 128
        %1002 = vxpose.xlu0.b32.cont [2/16] 0.0, 128
        %1003 = vxpose.xlu0.b32.cont [3/16] 0.0, 128
        %1004 = vxpose.xlu0.b32.cont [4/16] 0.0, 128
        %1005 = vxpose.xlu0.b32.cont [5/16] 0.0, 128
        %1006 = vxpose.xlu0.b32.cont [6/16] 0.0, 128
        %1007 = vxpose.xlu0.b32.cont [7/16] 0.0, 128
        %1008 = vxpose.xlu0.b32.cont [8/16] 0.0, 128
        %1009 = vxpose.xlu0.b32.cont [9/16] 0.0, 128
        %1010 = vxpose.xlu0.b32.cont [10/16] 0.0, 128
        %1011 = vxpose.xlu0.b32.cont [11/16] 0.0, 128
        %1012 = vxpose.xlu0.b32.cont [12/16] 0.0, 128
        %1013 = vxpose.xlu0.b32.cont [13/16] 0.0, 128
        %1014 = vxpose.xlu0.b32.cont [14/16] 0.0, 128
        %1015 = vxpose.xlu0.b32.cont [15/16] 0.0, 128
        %1016 = vxpose.xlu0.b32.end [16/16] 0.0, 128
        %v1017 = vpop.trf.xlu0
        %v1018 = vpop.trf.xlu0
        %v1019 = vpop.trf.xlu0
        %v1020 = vpop.trf.xlu0
        %v1021 = vpop.trf.xlu0
        %v1022 = vpop.trf.xlu0
        %v1023 = vpop.trf.xlu0
        %v1024 = vpop.trf.xlu0
        %v1025 = vpop.trf.xlu0
        %v1026 = vpop.trf.xlu0
        %v1027 = vpop.trf.xlu0
        %v1028 = vpop.trf.xlu0
        %v1029 = vpop.trf.xlu0
        %v1030 = vpop.trf.xlu0
        %v1031 = vpop.trf.xlu0
        %v1032 = vpop.trf.xlu0
        %v1034 = vsel %vm541, %v998, 0
        %1036 = vmatprep.subr.mxu0 0.0
        %1037 = vmatpush1.msra.mxu0 0.0
        %1038 = vmatprep.subr.mxu0 0.0
        %1039 = vmatpush1.msra.mxu0 0.0
        %1040 = vmatprep.subr.mxu0 0.0
        %1041 = vmatpush1.msra.mxu0 0.0
        %1042 = vmatprep.subr.mxu0 0.0
        %1043 = vmatpush1.msra.mxu0 0.0
        %1044 = vmatprep.subr.mxu0 0.0
        %1045 = vmatpush1.msra.mxu0 0.0
        %1046 = vmatprep.subr.mxu0 0.0
        %1047 = vmatpush1.msra.mxu0 0.0
        %1048 = vmatprep.subr.mxu0 0.0
        %1049 = vmatpush1.msra.mxu0 0.0
        %1050 = vmatprep.subr.mxu0 0.0
        %1051 = vmatpush1.msra.mxu0 0.0
        %1052 = vmatprep.subr.mxu0 0.0
        %1053 = vmatpush1.msra.mxu0 0.0
        %1054 = vmatprep.subr.mxu0 0.0
        %1055 = vmatpush1.msra.mxu0 0.0
        %1056 = vmatprep.subr.mxu0 0.0
        %1057 = vmatpush1.msra.mxu0 0.0
        %1058 = vmatprep.subr.mxu0 0.0
        %1059 = vmatpush1.msra.mxu0 0.0
        %1060 = vmatprep.subr.mxu0 0.0
        %1061 = vmatpush1.msra.mxu0 %v1020
        %1062 = vmatprep.subr.mxu0 0.0
        %1063 = vmatpush1.msra.mxu0 %v1019
        %1064 = vmatprep.subr.mxu0 0.0
        %1065 = vmatpush1.msra.mxu0 %v1018
        %1066 = vmatprep.subr.mxu0 0.0
        %1067 = vmatpush1.msra.mxu0 %v1017
        %1068 = vmatprep.subr.mxu0 0.0
        %1069 = vmatpush2.msra.mxu0 0.0
        %1070 = vmatprep.subr.mxu0 0.0
        %1071 = vmatpush2.msra.mxu0 0.0
        %1072 = vmatprep.subr.mxu0 0.0
        %1073 = vmatpush2.msra.mxu0 0.0
        %1074 = vmatprep.subr.mxu0 0.0
        %1075 = vmatpush2.msra.mxu0 0.0
        %1076 = vmatprep.subr.mxu0 0.0
        %1077 = vmatpush2.msra.mxu0 0.0
        %1078 = vmatprep.subr.mxu0 0.0
        %1079 = vmatpush2.msra.mxu0 0.0
        %1080 = vmatprep.subr.mxu0 0.0
        %1081 = vmatpush2.msra.mxu0 0.0
        %1082 = vmatprep.subr.mxu0 0.0
        %1083 = vmatpush2.msra.mxu0 0.0
        %1084 = vmatprep.subr.mxu0 0.0
        %1085 = vmatpush2.msra.mxu0 0.0
        %1086 = vmatprep.subr.mxu0 0.0
        %1087 = vmatpush2.msra.mxu0 0.0
        %1088 = vmatprep.subr.mxu0 0.0
        %1089 = vmatpush2.msra.mxu0 0.0
        %1090 = vmatprep.subr.mxu0 0.0
        %1091 = vmatpush2.msra.mxu0 0.0
        %1092 = vmatprep.subr.mxu0 0.0
        %1093 = vmatpush2.msra.mxu0 0.0
        %1094 = vmatprep.subr.mxu0 0.0
        %1095 = vmatpush2.msra.mxu0 0.0
        %1096 = vmatprep.subr.mxu0 0.0
        %1097 = vmatpush2.msra.mxu0 0.0
        %1098 = vmatprep.subr.mxu0 0.0
        %1099 = vmatpush2.msra.mxu0 0.0
        %1100 = vmatprep.mubr.f32.mxu0 0.0
        %1101 = vmatmul.mubr.f32.gmra.mxu0 %v1034
        %v1102 = vpop.f32.mrf.mxu0
        %v1103 = vadd.f32 0.0, %v1102
        %v1104 = vpop.f32.mrf.mxu0
        %1105 = vdwg.mxu0
        %v1106 = vmul.f32 %v1103, 0.35355338
        %v1107 = vsel %vm826, %v1106, -inf
        %1108 = vmax.xlane.f32.xlu0 %v1107
        %v1109 = vpop.xlane.xlu0 %1108
        %v1110 = vsub.f32 %v1106, %v1109
        %v1111 = vmul.f32 %v1110, 1.442695
        %v1112 = vpow.pop %v1111
        %v1113 = vsel %vm826, %v1112, 0.0
        %1114 = vadd.xlane.f32.xlu0 %v1113
        %v1115 = vpop.xlane.xlu0 %1114
        %v1116 = vrcp.pop %v1115
        %v1117 = vmul.f32 %v1112, %v1116
        %1118 = vst.msk [vmem:[%s528] sm:$0xff] %vm826, %v1117
        %v1120 = vsel %vm826, %v1017, 0
        %v1123 = vsel %vm826, %v1018, 0
        %v1126 = vsel %vm826, %v1019, 0
        %v1129 = vsel %vm826, %v1020, 0
        %1131 = vmatprep.subr.mxu0 0.0
        %1132 = vmatpush1.msra.mxu0 0.0
        %1133 = vmatprep.subr.mxu0 0.0
        %1134 = vmatpush1.msra.mxu0 0.0
        %1135 = vmatprep.subr.mxu0 0.0
        %1136 = vmatpush1.msra.mxu0 0.0
        %1137 = vmatprep.subr.mxu0 0.0
        %1138 = vmatpush1.msra.mxu0 0.0
        %1139 = vmatprep.subr.mxu0 0.0
        %1140 = vmatpush1.msra.mxu0 0.0
        %1141 = vmatprep.subr.mxu0 0.0
        %1142 = vmatpush1.msra.mxu0 0.0
        %1143 = vmatprep.subr.mxu0 0.0
        %1144 = vmatpush1.msra.mxu0 0.0
        %1145 = vmatprep.subr.mxu0 0.0
        %1146 = vmatpush1.msra.mxu0 0.0
        %1147 = vmatprep.subr.mxu0 0.0
        %1148 = vmatpush1.msra.mxu0 0.0
        %1149 = vmatprep.subr.mxu0 0.0
        %1150 = vmatpush1.msra.mxu0 0.0
        %1151 = vmatprep.subr.mxu0 0.0
        %1152 = vmatpush1.msra.mxu0 0.0
        %1153 = vmatprep.subr.mxu0 0.0
        %1154 = vmatpush1.msra.mxu0 0.0
        %1155 = vmatprep.subr.mxu0 0.0
        %1156 = vmatpush1.msra.mxu0 0.0
        %1157 = vmatprep.subr.mxu0 0.0
        %1158 = vmatpush1.msra.mxu0 0.0
        %1159 = vmatprep.subr.mxu0 0.0
        %1160 = vmatpush1.msra.mxu0 0.0
        %1161 = vmatprep.subr.mxu0 0.0
        %1162 = vmatpush1.msra.mxu0 %v1117
        %1163 = vmatprep.subr.mxu0 0.0
        %1164 = vmatpush2.msra.mxu0 0.0
        %1165 = vmatprep.subr.mxu0 0.0
        %1166 = vmatpush2.msra.mxu0 0.0
        %1167 = vmatprep.subr.mxu0 0.0
        %1168 = vmatpush2.msra.mxu0 0.0
        %1169 = vmatprep.subr.mxu0 0.0
        %1170 = vmatpush2.msra.mxu0 0.0
        %1171 = vmatprep.subr.mxu0 0.0
        %1172 = vmatpush2.msra.mxu0 0.0
        %1173 = vmatprep.subr.mxu0 0.0
        %1174 = vmatpush2.msra.mxu0 0.0
        %1175 = vmatprep.subr.mxu0 0.0
        %1176 = vmatpush2.msra.mxu0 0.0
        %1177 = vmatprep.subr.mxu0 0.0
        %1178 = vmatpush2.msra.mxu0 0.0
        %1179 = vmatprep.subr.mxu0 0.0
        %1180 = vmatpush2.msra.mxu0 0.0
        %1181 = vmatprep.subr.mxu0 0.0
        %1182 = vmatpush2.msra.mxu0 0.0
        %1183 = vmatprep.subr.mxu0 0.0
        %1184 = vmatpush2.msra.mxu0 0.0
        %1185 = vmatprep.subr.mxu0 0.0
        %1186 = vmatpush2.msra.mxu0 0.0
        %1187 = vmatprep.subr.mxu0 0.0
        %1188 = vmatpush2.msra.mxu0 0.0
        %1189 = vmatprep.subr.mxu0 0.0
        %1190 = vmatpush2.msra.mxu0 0.0
        %1191 = vmatprep.subr.mxu0 0.0
        %1192 = vmatpush2.msra.mxu0 0.0
        %1193 = vmatprep.subr.mxu0 0.0
        %1194 = vmatpush2.msra.mxu0 0.0
        %1195 = vmatprep.mubr.f32.mxu0 0.0
        %1196 = vmatmul.mubr.f32.gmra.mxu0 %v1120
        %v1197 = vpop.f32.mrf.mxu0
        %v1198 = vadd.f32 0.0, %v1197
        %v1199 = vpop.f32.mrf.mxu0
        %1200 = vmatprep.mubr.f32.mxu0 0.0
        %1201 = vmatmul.mubr.f32.gmra.mxu0 %v1123
        %v1202 = vpop.f32.mrf.mxu0
        %v1203 = vadd.f32 0.0, %v1202
        %v1204 = vpop.f32.mrf.mxu0
        %1205 = vmatprep.mubr.f32.mxu0 0.0
        %1206 = vmatmul.mubr.f32.gmra.mxu0 %v1126
        %v1207 = vpop.f32.mrf.mxu0
        %v1208 = vadd.f32 0.0, %v1207
        %v1209 = vpop.f32.mrf.mxu0
        %1210 = vmatprep.mubr.f32.mxu0 0.0
        %1211 = vmatmul.mubr.f32.gmra.mxu0 %v1129
        %v1212 = vpop.f32.mrf.mxu0
        %v1213 = vadd.f32 0.0, %v1212
        %v1214 = vpop.f32.mrf.mxu0
        %1215 = vdwg.mxu0
        %v1217 = vsel %vm826, %v1198, 0
        %v1220 = vsel %vm826, %v1203, 0
        %v1223 = vsel %vm826, %v1208, 0
        %v1226 = vsel %vm826, %v1213, 0
        %1228 = vmatprep.subr.mxu0 0.0
        %1229 = vmatpush1.msra.mxu0 0.0
        %1230 = vmatprep.subr.mxu0 0.0
        %1231 = vmatpush1.msra.mxu0 0.0
        %1232 = vmatprep.subr.mxu0 0.0
        %1233 = vmatpush1.msra.mxu0 0.0
        %1234 = vmatprep.subr.mxu0 0.0
        %1235 = vmatpush1.msra.mxu0 0.0
        %1236 = vmatprep.subr.mxu0 0.0
        %1237 = vmatpush1.msra.mxu0 0.0
        %1238 = vmatprep.subr.mxu0 0.0
        %1239 = vmatpush1.msra.mxu0 0.0
        %1240 = vmatprep.subr.mxu0 0.0
        %1241 = vmatpush1.msra.mxu0 0.0
        %1242 = vmatprep.subr.mxu0 0.0
        %1243 = vmatpush1.msra.mxu0 0.0
        %1244 = vmatprep.subr.mxu0 0.0
        %1245 = vmatpush1.msra.mxu0 0.0
        %1246 = vmatprep.subr.mxu0 0.0
        %1247 = vmatpush1.msra.mxu0 0.0
        %1248 = vmatprep.subr.mxu0 0.0
        %1249 = vmatpush1.msra.mxu0 0.0
        %1250 = vmatprep.subr.mxu0 0.0
        %1251 = vmatpush1.msra.mxu0 0.0
        %1252 = vmatprep.subr.mxu0 0.0
        %1253 = vmatpush1.msra.mxu0 0.0
        %1254 = vmatprep.subr.mxu0 0.0
        %1255 = vmatpush1.msra.mxu0 0.0
        %1256 = vmatprep.subr.mxu0 0.0
        %1257 = vmatpush1.msra.mxu0 0.0
        %1258 = vmatprep.subr.mxu0 0.0
        %1259 = vmatpush1.msra.mxu0 %v789
        %1260 = vmatprep.subr.mxu0 0.0
        %1261 = vmatpush2.msra.mxu0 0.0
        %1262 = vmatprep.subr.mxu0 0.0
        %1263 = vmatpush2.msra.mxu0 0.0
        %1264 = vmatprep.subr.mxu0 0.0
        %1265 = vmatpush2.msra.mxu0 0.0
        %1266 = vmatprep.subr.mxu0 0.0
        %1267 = vmatpush2.msra.mxu0 0.0
        %1268 = vmatprep.subr.mxu0 0.0
        %1269 = vmatpush2.msra.mxu0 0.0
        %1270 = vmatprep.subr.mxu0 0.0
        %1271 = vmatpush2.msra.mxu0 0.0
        %1272 = vmatprep.subr.mxu0 0.0
        %1273 = vmatpush2.msra.mxu0 0.0
        %1274 = vmatprep.subr.mxu0 0.0
        %1275 = vmatpush2.msra.mxu0 0.0
        %1276 = vmatprep.subr.mxu0 0.0
        %1277 = vmatpush2.msra.mxu0 0.0
        %1278 = vmatprep.subr.mxu0 0.0
        %1279 = vmatpush2.msra.mxu0 0.0
        %1280 = vmatprep.subr.mxu0 0.0
        %1281 = vmatpush2.msra.mxu0 0.0
        %1282 = vmatprep.subr.mxu0 0.0
        %1283 = vmatpush2.msra.mxu0 0.0
        %1284 = vmatprep.subr.mxu0 0.0
        %1285 = vmatpush2.msra.mxu0 0.0
        %1286 = vmatprep.subr.mxu0 0.0
        %1287 = vmatpush2.msra.mxu0 0.0
        %1288 = vmatprep.subr.mxu0 0.0
        %1289 = vmatpush2.msra.mxu0 0.0
        %1290 = vmatprep.subr.mxu0 0.0
        %1291 = vmatpush2.msra.mxu0 0.0
        %1292 = vmatprep.mubr.f32.mxu0 0.0
        %1293 = vmatmul.mubr.f32.gmra.mxu0 %v1217
        %v1294 = vpop.f32.mrf.mxu0
        %v1295 = vadd.f32 0.0, %v1294
        %v1296 = vpop.f32.mrf.mxu0
        %1297 = vmatprep.mubr.f32.mxu0 0.0
        %1298 = vmatmul.mubr.f32.gmra.mxu0 %v1220
        %v1299 = vpop.f32.mrf.mxu0
        %v1300 = vadd.f32 0.0, %v1299
        %v1301 = vpop.f32.mrf.mxu0
        %1302 = vmatprep.mubr.f32.mxu0 0.0
        %1303 = vmatmul.mubr.f32.gmra.mxu0 %v1223
        %v1304 = vpop.f32.mrf.mxu0
        %v1305 = vadd.f32 0.0, %v1304
        %v1306 = vpop.f32.mrf.mxu0
        %1307 = vmatprep.mubr.f32.mxu0 0.0
        %1308 = vmatmul.mubr.f32.gmra.mxu0 %v1226
        %v1309 = vpop.f32.mrf.mxu0
        %v1310 = vadd.f32 0.0, %v1309
        %v1311 = vpop.f32.mrf.mxu0
        %1312 = vdwg.mxu0
        %v1313 = vmul.f32 %v1295, %v790
        %v1314 = vmul.f32 %v1300, %v791
        %v1315 = vmul.f32 %v1305, %v792
        %v1316 = vmul.f32 %v1310, %v793
        %v1318 = vsel %vm541, %v786, 0
        %v1321 = vsel %vm541, %v1313, 0
        %v1324 = vsel %vm541, %v1314, 0
        %v1327 = vsel %vm541, %v1315, 0
        %v1330 = vsel %vm541, %v1316, 0
        %1332 = vmatprep.subr.mxu0 0.0
        %1333 = vmatpush1.xpose.msra.mxu0 0.0
        %1334 = vmatprep.subr.mxu0 0.0
        %1335 = vmatpush1.xpose.msra.mxu0 0.0
        %1336 = vmatprep.subr.mxu0 0.0
        %1337 = vmatpush1.xpose.msra.mxu0 0.0
        %1338 = vmatprep.subr.mxu0 0.0
        %1339 = vmatpush1.xpose.msra.mxu0 0.0
        %1340 = vmatprep.subr.mxu0 0.0
        %1341 = vmatpush1.xpose.msra.mxu0 0.0
        %1342 = vmatprep.subr.mxu0 0.0
        %1343 = vmatpush1.xpose.msra.mxu0 0.0
        %1344 = vmatprep.subr.mxu0 0.0
        %1345 = vmatpush1.xpose.msra.mxu0 0.0
        %1346 = vmatprep.subr.mxu0 0.0
        %1347 = vmatpush1.xpose.msra.mxu0 0.0
        %1348 = vmatprep.subr.mxu0 0.0
        %1349 = vmatpush1.xpose.msra.mxu0 0.0
        %1350 = vmatprep.subr.mxu0 0.0
        %1351 = vmatpush1.xpose.msra.mxu0 0.0
        %1352 = vmatprep.subr.mxu0 0.0
        %1353 = vmatpush1.xpose.msra.mxu0 0.0
        %1354 = vmatprep.subr.mxu0 0.0
        %1355 = vmatpush1.xpose.msra.mxu0 0.0
        %1356 = vmatprep.subr.mxu0 0.0
        %1357 = vmatpush1.xpose.msra.mxu0 %v1330
        %1358 = vmatprep.subr.mxu0 0.0
        %1359 = vmatpush1.xpose.msra.mxu0 %v1327
        %1360 = vmatprep.subr.mxu0 0.0
        %1361 = vmatpush1.xpose.msra.mxu0 %v1324
        %1362 = vmatprep.subr.mxu0 0.0
        %1363 = vmatpush1.xpose.msra.mxu0 %v1321
        %1364 = vmatprep.subr.mxu0 0.0
        %1365 = vmatpush2.xpose.msra.mxu0 0.0
        %1366 = vmatprep.subr.mxu0 0.0
        %1367 = vmatpush2.xpose.msra.mxu0 0.0
        %1368 = vmatprep.subr.mxu0 0.0
        %1369 = vmatpush2.xpose.msra.mxu0 0.0
        %1370 = vmatprep.subr.mxu0 0.0
        %1371 = vmatpush2.xpose.msra.mxu0 0.0
        %1372 = vmatprep.subr.mxu0 0.0
        %1373 = vmatpush2.xpose.msra.mxu0 0.0
        %1374 = vmatprep.subr.mxu0 0.0
        %1375 = vmatpush2.xpose.msra.mxu0 0.0
        %1376 = vmatprep.subr.mxu0 0.0
        %1377 = vmatpush2.xpose.msra.mxu0 0.0
        %1378 = vmatprep.subr.mxu0 0.0
        %1379 = vmatpush2.xpose.msra.mxu0 0.0
        %1380 = vmatprep.subr.mxu0 0.0
        %1381 = vmatpush2.xpose.msra.mxu0 0.0
        %1382 = vmatprep.subr.mxu0 0.0
        %1383 = vmatpush2.xpose.msra.mxu0 0.0
        %1384 = vmatprep.subr.mxu0 0.0
        %1385 = vmatpush2.xpose.msra.mxu0 0.0
        %1386 = vmatprep.subr.mxu0 0.0
        %1387 = vmatpush2.xpose.msra.mxu0 0.0
        %1388 = vmatprep.subr.mxu0 0.0
        %1389 = vmatpush2.xpose.msra.mxu0 0.0
        %1390 = vmatprep.subr.mxu0 0.0
        %1391 = vmatpush2.xpose.msra.mxu0 0.0
        %1392 = vmatprep.subr.mxu0 0.0
        %1393 = vmatpush2.xpose.msra.mxu0 0.0
        %1394 = vmatprep.subr.mxu0 0.0
        %1395 = vmatpush2.xpose.msra.mxu0 0.0
        %1396 = vmatprep.mubr.f32.mxu0 0.0
        %1397 = vmatmul.mubr.f32.gmra.mxu0 %v1318
        %v1398 = vpop.f32.mrf.mxu0
        %v1399 = vadd.f32 0.0, %v1398
        %v1400 = vpop.f32.mrf.mxu0
        %1401 = vdwg.mxu0
        %s1402 = sld [smem:[#allocation2]]
        %v1403 = vstv %s1402
        %v1404 = vmul.f32 %v1403, %v1399
        %v1405 = vadd.f32 %v786, %v1404
        %v1406 = vld [vmem:[#allocation11] sm:$0xff]
        %v1407 = vld [vmem:[#allocation11 + $0x8] sm:$0xff]
        %v1408 = vld [vmem:[#allocation11 + $0x10] sm:$0xff]
        %v1409 = vld [vmem:[#allocation11 + $0x18] sm:$0xff]
        %v1410 = vld [vmem:[%s6] sm:$0x1]
        %v1412 = vlaneseq
        %v1413 = vshrl.u32 %v1412, 7
        %v1414 = vsub.s32 0, %v1413
        %v1415 = vrot.slane %v1410, %v1414
        %v1418 = vsel %vm541, %v1405, 0
        %1420 = vmatprep.subr.mxu0 0.0
        %1421 = vmatpush1.msra.mxu0 0.0
        %1422 = vmatprep.subr.mxu0 0.0
        %1423 = vmatpush1.msra.mxu0 0.0
        %1424 = vmatprep.subr.mxu0 0.0
        %1425 = vmatpush1.msra.mxu0 0.0
        %1426 = vmatprep.subr.mxu0 0.0
        %1427 = vmatpush1.msra.mxu0 0.0
        %1428 = vmatprep.subr.mxu0 0.0
        %1429 = vmatpush1.msra.mxu0 0.0
        %1430 = vmatprep.subr.mxu0 0.0
        %1431 = vmatpush1.msra.mxu0 0.0
        %1432 = vmatprep.subr.mxu0 0.0
        %1433 = vmatpush1.msra.mxu0 0.0
        %1434 = vmatprep.subr.mxu0 0.0
        %1435 = vmatpush1.msra.mxu0 0.0
        %1436 = vmatprep.subr.mxu0 0.0
        %1437 = vmatpush1.msra.mxu0 0.0
        %1438 = vmatprep.subr.mxu0 0.0
        %1439 = vmatpush1.msra.mxu0 0.0
        %1440 = vmatprep.subr.mxu0 0.0
        %1441 = vmatpush1.msra.mxu0 0.0
        %1442 = vmatprep.subr.mxu0 0.0
        %1443 = vmatpush1.msra.mxu0 0.0
        %1444 = vmatprep.subr.mxu0 0.0
        %1445 = vmatpush1.msra.mxu0 %v1409
        %1446 = vmatprep.subr.mxu0 0.0
        %1447 = vmatpush1.msra.mxu0 %v1408
        %1448 = vmatprep.subr.mxu0 0.0
        %1449 = vmatpush1.msra.mxu0 %v1407
        %1450 = vmatprep.subr.mxu0 0.0
        %1451 = vmatpush1.msra.mxu0 %v1406
        %1452 = vmatprep.subr.mxu0 0.0
        %1453 = vmatpush2.msra.mxu0 0.0
        %1454 = vmatprep.subr.mxu0 0.0
        %1455 = vmatpush2.msra.mxu0 0.0
        %1456 = vmatprep.subr.mxu0 0.0
        %1457 = vmatpush2.msra.mxu0 0.0
        %1458 = vmatprep.subr.mxu0 0.0
        %1459 = vmatpush2.msra.mxu0 0.0
        %1460 = vmatprep.subr.mxu0 0.0
        %1461 = vmatpush2.msra.mxu0 0.0
        %1462 = vmatprep.subr.mxu0 0.0
        %1463 = vmatpush2.msra.mxu0 0.0
        %1464 = vmatprep.subr.mxu0 0.0
        %1465 = vmatpush2.msra.mxu0 0.0
        %1466 = vmatprep.subr.mxu0 0.0
        %1467 = vmatpush2.msra.mxu0 0.0
        %1468 = vmatprep.subr.mxu0 0.0
        %1469 = vmatpush2.msra.mxu0 0.0
        %1470 = vmatprep.subr.mxu0 0.0
        %1471 = vmatpush2.msra.mxu0 0.0
        %1472 = vmatprep.subr.mxu0 0.0
        %1473 = vmatpush2.msra.mxu0 0.0
        %1474 = vmatprep.subr.mxu0 0.0
        %1475 = vmatpush2.msra.mxu0 0.0
        %1476 = vmatprep.subr.mxu0 0.0
        %1477 = vmatpush2.msra.mxu0 0.0
        %1478 = vmatprep.subr.mxu0 0.0
        %1479 = vmatpush2.msra.mxu0 0.0
        %1480 = vmatprep.subr.mxu0 0.0
        %1481 = vmatpush2.msra.mxu0 0.0
        %1482 = vmatprep.subr.mxu0 0.0
        %1483 = vmatpush2.msra.mxu0 0.0
        %1484 = vmatprep.mubr.f32.mxu0 0.0
        %1485 = vmatmul.mubr.f32.gmra.mxu0 %v1418
        %v1486 = vpop.f32.mrf.mxu0
        %v1487 = vadd.f32 %v1415, %v1486
        %v1488 = vpop.f32.mrf.mxu0
        %1489 = vdwg.mxu0
        %1490 = vst.msk [vmem:[%s521] sm:$0xff] %vm541, %v1487
        %s1491 = sand.u32 %s271, 1
        %s1492 = scalar_lea.sflag [#allocation5], %s1491
        %s1493 = sand.u32 %s271, 1
        %s1494 = smul.addr %s1493, 8
        %s1495 = scalar_lea.vmem [#allocation14], %s1494
        %s1496 = sand.u32 %s297, 1
        %s1497 = scalar_lea.sflag [#allocation16], %s1496
        %s1498 = sand.u32 %s297, 1
        %s1499 = smul.addr %s1498, 8
        %s1500 = scalar_lea.vmem [#allocation15], %s1499
        // Predicated region
        $region85: #{tpu_custom_call.1} parent=59 // pred_check
          %p1501 = pneg %p281
        $region86: #{tpu_custom_call.1} parent=59 // pred_check_branch
          %1503 = sbr.rel (%p1501) target = $region88
        $region87: #{tpu_custom_call.1} parent=59 // pred_region
          %s1505 = ssub.s32 128, 128
          %1506 = vsyncadd %s1492, %s1505
          %s1507 = smul.addr %s38, 128
          %s1508 = scalar_lea.hbm %s10, %s1507
          %s1510 = sshll.u32 %s1495, 4
          %s1511 = int_to_ptr.vmem [resolvable:$true] %s1510
          %1513 = dma.vmem_to_hbm [thread:$0]  %s1511, 128, %s1508, %s1492
        $region88: #{tpu_custom_call.1} parent=59 // pred_fallthru
          _
        // Predicated region
        $region89: #{tpu_custom_call.1} parent=59 // pred_check
          %p1514 = pneg %p307
        $region90: #{tpu_custom_call.1} parent=59 // pred_check_branch
          %1516 = sbr.rel (%p1514) target = $region92
        $region91: #{tpu_custom_call.1} parent=59 // pred_region
          %s1518 = ssub.s32 128, 128
          %1519 = vsyncadd %s1497, %s1518
          %s1520 = smul.addr %s38, 128
          %s1521 = scalar_lea.hbm %s11, %s1520
          %s1523 = sshll.u32 %s1500, 4
          %s1524 = int_to_ptr.vmem [resolvable:$true] %s1523
          %1526 = dma.vmem_to_hbm [thread:$0]  %s1524, 128, %s1521, %s1497
        $region92: #{tpu_custom_call.1} parent=59 // pred_fallthru
          _
      $region60: #{tpu_custom_call.1} parent=5 // pred_fallthru
        _
      %p1527 = scmp.le.s32.totalorder 2, %s33
      // Predicated region
      $region93: #{tpu_custom_call.1} parent=5 // pred_check
        %p1528 = pneg %p1527
      $region94: #{tpu_custom_call.1} parent=5 // pred_check_branch
        %1530 = sbr.rel (%p1528) target = $region96
      $region95: #{tpu_custom_call.1} parent=5 // pred_region
        %s1531 = ssub.s32 %s33, 2
        // Predicated region
        $region97: #{tpu_custom_call.1} parent=95 // pred_check
          %p1532 = pneg %p287
        $region98: #{tpu_custom_call.1} parent=95 // pred_check_branch
          %1534 = sbr.rel (%p1532) target = $region100
        $region99: #{tpu_custom_call.1} parent=95 // pred_region
          %s1535 = sand.u32 %s272, 1
          %s1536 = scalar_lea.sflag [#allocation5], %s1535
          %s1537 = sand.u32 %s272, 1
          %s1538 = smul.addr %s1537, 8
          %s1539 = scalar_lea.vmem [#allocation14], %s1538
          %1540 = dma.done %s1536, 128
        $region100: #{tpu_custom_call.1} parent=95 // pred_fallthru
          _
        // Predicated region
        $region101: #{tpu_custom_call.1} parent=95 // pred_check
          %p1541 = pneg %p313
        $region102: #{tpu_custom_call.1} parent=95 // pred_check_branch
          %1543 = sbr.rel (%p1541) target = $region104
        $region103: #{tpu_custom_call.1} parent=95 // pred_region
          %s1544 = sand.u32 %s298, 1
          %s1545 = scalar_lea.sflag [#allocation16], %s1544
          %s1546 = sand.u32 %s298, 1
          %s1547 = smul.addr %s1546, 8
          %s1548 = scalar_lea.vmem [#allocation15], %s1547
          %1549 = dma.done %s1545, 128
        $region104: #{tpu_custom_call.1} parent=95 // pred_fallthru
          _
      $region96: #{tpu_custom_call.1} parent=5 // pred_fallthru
        _
    $region6: #{tpu_custom_call.1} parent=1 // loop_footer
      %s37 = sadd.s32 1, %s33
    $region7: #{tpu_custom_call.1} parent=1 // loop_footer_branch
      %32 = sbr.rel target = $region3
    $region8: #{tpu_custom_call.1} parent=1 // loop_exit
      _
    %1550 = vsyncpa [#allocation4], 1
    %s1551 = scalar_lea.sflag [#allocation4], 1
    %1552 = vsyncpa %s1551, 1
    %1553 = vsyncpa [#allocation7], 1
    %s1554 = scalar_lea.sflag [#allocation7], 1
    %1555 = vsyncpa %s1554, 1
    %1556 = vsyncpa [#allocation10], 1
    %1557 = vsyncpa [#allocation13], 1
    %1558 = vsyncpa [#allocation5], 1
    %s1559 = scalar_lea.sflag [#allocation5], 1
    %1560 = vsyncpa %s1559, 1
    %1561 = vsyncpa [#allocation16], 1
    %s1562 = scalar_lea.sflag [#allocation16], 1
    %1563 = vsyncpa %s1562, 1

</llo_original>
